<compile_context>
chip_gen: v5e
topology: v5e:2x2
jax: 0.10.0
libtpu: 0.0.40
codegen_flags: <defaults>
</compile_context>

<pallas_src>
import functools

import jax
import jax.numpy as jnp
from jax.experimental import pallas as pl
from jax.experimental.pallas import tpu as pltpu


# ----------------------------------------------------------------------------
# Fused conv + multi-head dot-attention kernel (built per number of conv widths)
# ----------------------------------------------------------------------------
def make_cnn_attn_kernel(nseg, scale):
    def kernel(*args):
        x_refs = args[0:nseg]                 # (B, L_s, K_s*E)  bf16  im2col'd embeddings
        mask_refs = args[nseg:2 * nseg]       # (B, L_s, 1)      f32   0 / -inf
        wconv_refs = args[2 * nseg:3 * nseg]  # (K_s*E, F)       bf16
        bconv_refs = args[3 * nseg:4 * nseg]  # (1, F)           f32
        wattn_ref = args[4 * nseg]            # (F, C)           bf16  all heads stacked
        wfc_ref = args[4 * nseg + 1]          # (C, F, O)        f32
        bfc_ref = args[4 * nseg + 2]          # (C, O)           f32
        out_ref = args[4 * nseg + 3]          # (B, C, O)        f32

        B, C, O = out_ref.shape
        F = wattn_ref.shape[0]

        # Pass 1: conv + ReLU + attention logits per segment; track the running max
        # over the (virtually concatenated) time axis so no in-kernel concatenation.
        acts = []
        logits = []
        m = None
        for s in range(nseg):
            xu = x_refs[s][...]                                        # (B, L, K*E) bf16
            act = jnp.einsum('blk,kf->blf', xu, wconv_refs[s][...],
                             preferred_element_type=jnp.float32)
            act = jnp.maximum(act + bconv_refs[s][...], 0.0)           # (B, L, F) f32
            act_b = act.astype(jnp.bfloat16)
            logit = jnp.einsum('blf,fc->blc', act_b, wattn_ref[...],
                               preferred_element_type=jnp.float32) * scale
            logit = logit + mask_refs[s][...]                          # additive pad mask
            seg_max = jnp.max(logit, axis=1)                           # (B, C)
            m = seg_max if m is None else jnp.maximum(m, seg_max)
            acts.append(act_b)
            logits.append(logit)
        # NOTE: a row whose mask is entirely -inf yields NaN, matching the PyTorch ref.

        # Pass 2: masked softmax over the concatenated time axis + attention context.
        denom = jnp.zeros((B, C), jnp.float32)
        numer = jnp.zeros((B, C, F), jnp.float32)
        for s in range(nseg):
            e = jnp.exp(logits[s] - m[:, None, :])                     # (B, L, C) f32
            denom = denom + jnp.sum(e, axis=1)                         # (B, C)
            e_t = jnp.swapaxes(e, 1, 2).astype(jnp.bfloat16)           # (B, C, L)
            numer = numer + jnp.einsum('bcl,blf->bcf', e_t, acts[s],
                                       preferred_element_type=jnp.float32)

        inv_denom = pl.reciprocal(denom, approx=True)                  # (B, C)
        h = numer * inv_denom[:, :, None]                              # (B, C, F)

        # Per-class FC: y[b,c,o] = sum_f h[b,c,f] * Wfc[c,f,o] + bfc[c,o]
        # (num_out is tiny -> cheap VPU broadcast-reduce instead of a batched matmul)
        y = jnp.sum(h[:, :, :, None] * wfc_ref[...][None, :, :, :], axis=2)
        out_ref[...] = y + bfc_ref[...][None, :, :]

    return kernel


# ----------------------------------------------------------------------------
# Glue: pad mask (replicates CNN_Attn.generate_pad_mask, including its slicing)
# ----------------------------------------------------------------------------
def generate_pad_mask(caption_length, max_len, Ks):
    nseg = len(Ks)
    total_len = max_len * nseg - sum(K - 1 for K in Ks)
    B = caption_length.shape[0]
    pos = jnp.arange(total_len, dtype=jnp.int32)[None, :]
    keep = jnp.zeros((B, total_len), dtype=jnp.bool_)
    for ind2, K in enumerate(Ks):
        start = max_len * ind2
        end = caption_length.astype(jnp.int32) - (K - 1)
        end = jnp.where(end < 0, total_len + end, end)  # python negative-end slicing
        keep = keep | ((pos >= start) & (pos < end[:, None]))
    return jnp.where(keep, 0.0, -jnp.inf).astype(jnp.float32)


# ----------------------------------------------------------------------------
# Full forward (glue + one fused Pallas call)
# ----------------------------------------------------------------------------
def cnn_attn_forward(params, encoded_captions, caption_length, Ks):
    B, T = encoded_captions.shape
    F = params['attn_w'].shape[0]
    C = params['attn_w'].shape[1]
    O = params['fc_w'].shape[-1]

    # Embedding lookup (gather) — glue.
    emb = jnp.take(params['embed'], encoded_captions, axis=0)          # (B, T, E) f32

    seg_lens = [T - K + 1 for K in Ks]

    # im2col unfold (glue): each Conv1d becomes a single MXU matmul inside the kernel.
    x_unfs = [
        jnp.concatenate([emb[:, k:k + L, :] for k in range(K)], axis=-1)
        .astype(jnp.bfloat16)                                          # (B, L, K*E)
        for K, L in zip(Ks, seg_lens)
    ]

    # Additive pad mask over the concatenated conv outputs, split per segment.
    mask = generate_pad_mask(caption_length, T, Ks)                    # (B, total_len)
    masks, off = [], 0
    for L in seg_lens:
        masks.append(mask[:, off:off + L][:, :, None])                 # (B, L, 1)
        off += L

    conv_ws = [w.astype(jnp.bfloat16) for w in params['conv_w']]
    conv_bs = list(params['conv_b'])
    attn_w = params['attn_w'].astype(jnp.bfloat16)

    args = x_unfs + masks + conv_ws + conv_bs + [attn_w, params['fc_w'], params['fc_b']]

    kernel = make_cnn_attn_kernel(len(Ks), float(F) ** -0.5)
    vmem = pl.BlockSpec(memory_space=pltpu.MemorySpace.VMEM)
    return pl.pallas_call(
        kernel,
        out_shape=jax.ShapeDtypeStruct((B, C, O), jnp.float32),
        in_specs=[vmem] * len(args),
        out_specs=vmem,
    )(*args)


# ----------------------------------------------------------------------------
# Pure-JAX reference (non-Pallas, f32) for correctness checking
# ----------------------------------------------------------------------------
def cnn_attn_reference(params, encoded_captions, caption_length, Ks):
    emb = jnp.take(params['embed'], encoded_captions, axis=0)
    B, T, E = emb.shape
    F = params['attn_w'].shape[0]
    outs = []
    for i, K in enumerate(Ks):
        L = T - K + 1
        xu = jnp.concatenate([emb[:, k:k + L, :] for k in range(K)], axis=-1)
        act = jax.nn.relu(jnp.einsum('blk,kf->blf', xu, params['conv_w'][i])
                          + params['conv_b'][i])
        outs.append(act)
    output = jnp.concatenate(outs, axis=1)                             # (B, total, F)
    mask = generate_pad_mask(caption_length, T, Ks)
    logits = (jnp.einsum('blf,fc->blc', output, params['attn_w']) / (F ** 0.5)
              + mask[:, :, None])
    attn = jax.nn.softmax(logits, axis=1)
    h = jnp.einsum('blc,blf->bcf', attn, output)
    return jnp.einsum('bcf,cfo->bco', h, params['fc_w']) + params['fc_b'][None]


def init_params(key, num_tokens, emb_dim, filters, Ks, num_classes, num_out):
    ks = jax.random.split(key, 4 + 2 * len(Ks))
    state = {'i': 0}
    s = 0.1

    def rnd(shape):
        k = ks[state['i']]
        state['i'] += 1
        return (s * jax.random.normal(k, shape)).astype(jnp.float32)

    return {
        'embed': rnd((num_tokens, emb_dim)),
        # Conv1d weights pre-flattened for im2col: W[k*E + e, f] == torch_weight[f, e, k]
        'conv_w': [rnd((K * emb_dim, filters)) for K in Ks],
        'conv_b': [rnd((1, filters)) for _ in Ks],
        # DotAttention.attn = Linear(F, 1, bias=False), stacked over classes, transposed.
        'attn_w': rnd((filters, num_classes)),
        # DotAttention.fc = Linear(F, num_out), stacked over classes, transposed.
        'fc_w': rnd((num_classes, filters, num_out)),
        'fc_b': rnd((num_classes, num_out)),
    }


if __name__ == "__main__":
    num_tokens, emb_dim, filters = 50, 16, 32
    conv_kernels = (3, 4, 5)
    num_classes, num_out = 14, 2
    B, T = 2, 8

    key = jax.random.PRNGKey(0)
    kp, kc = jax.random.split(key)
    params = init_params(kp, num_tokens, emb_dim, filters, conv_kernels,
                         num_classes, num_out)

    encoded_captions = jax.random.randint(kc, (B, T), 0, num_tokens, dtype=jnp.int32)
    caption_length = jnp.array([T, 5], dtype=jnp.int32)

    fwd = jax.jit(functools.partial(cnn_attn_forward, params, Ks=conv_kernels))
    y_hats = jax.block_until_ready(fwd(encoded_captions, caption_length))

    assert y_hats.shape == (B, num_classes, num_out)
    assert bool(jnp.all(jnp.isfinite(y_hats)))

    y_ref = cnn_attn_reference(params, encoded_captions, caption_length, conv_kernels)
    assert bool(jnp.allclose(y_hats, y_ref, atol=2e-2, rtol=2e-2))
    print("KERNEL_OK")
</pallas_src>

<mosaic_0001>
module attributes {stable_mosaic.version = 11 : i64} {
  func.func @kernel(%arg0: memref<2x6x48xbf16, #tpu.memory_space<vmem>>, %arg1: memref<2x5x64xbf16, #tpu.memory_space<vmem>>, %arg2: memref<2x4x80xbf16, #tpu.memory_space<vmem>>, %arg3: memref<2x6x1xf32, #tpu.memory_space<vmem>>, %arg4: memref<2x5x1xf32, #tpu.memory_space<vmem>>, %arg5: memref<2x4x1xf32, #tpu.memory_space<vmem>>, %arg6: memref<48x32xbf16, #tpu.memory_space<vmem>>, %arg7: memref<64x32xbf16, #tpu.memory_space<vmem>>, %arg8: memref<80x32xbf16, #tpu.memory_space<vmem>>, %arg9: memref<1x32xf32, #tpu.memory_space<vmem>>, %arg10: memref<1x32xf32, #tpu.memory_space<vmem>>, %arg11: memref<1x32xf32, #tpu.memory_space<vmem>>, %arg12: memref<32x14xbf16, #tpu.memory_space<vmem>>, %arg13: memref<14x32x2xf32, #tpu.memory_space<vmem>>, %arg14: memref<14x2xf32, #tpu.memory_space<vmem>>, %arg15: memref<2x14x2xf32, #tpu.memory_space<vmem>>) attributes {dimension_semantics = [], scalar_prefetch = 0 : i64, scratch_operands = 0 : i64, tpu.core_type = #tpu.core_type<tc>} {
    %c0 = arith.constant 0 : index
    %c0_0 = arith.constant 0 : index
    %c0_1 = arith.constant 0 : index
    %0 = vector.load %arg0[%c0, %c0_0, %c0_1] : memref<2x6x48xbf16, #tpu.memory_space<vmem>>, vector<2x6x48xbf16>
    %c0_2 = arith.constant 0 : index
    %c0_3 = arith.constant 0 : index
    %1 = vector.load %arg6[%c0_2, %c0_3] : memref<48x32xbf16, #tpu.memory_space<vmem>>, vector<48x32xbf16>
    "tpu.trace_start"() <{level = 10 : i32, message = "blk,kf->blf"}> : () -> ()
    %cst = arith.constant dense<0.000000e+00> : vector<2x6x32xf32>
    %2 = tpu.matmul %0, %1, %cst {dimension_numbers = #tpu.dot_dimension_numbers<[2], [0], [0, 1], [1], [0, 0, 0, 1, 1, 1], [], []>} : vector<2x6x48xbf16>, vector<48x32xbf16>, vector<2x6x32xf32> -> vector<2x6x32xf32>
    "tpu.trace_stop"() : () -> ()
    %c0_4 = arith.constant 0 : index
    %c0_5 = arith.constant 0 : index
    %3 = vector.load %arg9[%c0_4, %c0_5] : memref<1x32xf32, #tpu.memory_space<vmem>>, vector<1x32xf32>
    %4 = vector.shape_cast %3 : vector<1x32xf32> to vector<1x1x32xf32>
    %5 = vector.broadcast %4 : vector<1x1x32xf32> to vector<2x6x32xf32>
    %6 = arith.addf %2, %5 : vector<2x6x32xf32>
    %cst_6 = arith.constant 0.000000e+00 : f32
    %7 = vector.broadcast %cst_6 : f32 to vector<2x6x32xf32>
    %8 = arith.maximumf %6, %7 : vector<2x6x32xf32>
    %9 = arith.truncf %8 : vector<2x6x32xf32> to vector<2x6x32xbf16>
    %c0_7 = arith.constant 0 : index
    %c0_8 = arith.constant 0 : index
    %10 = vector.load %arg12[%c0_7, %c0_8] : memref<32x14xbf16, #tpu.memory_space<vmem>>, vector<32x14xbf16>
    "tpu.trace_start"() <{level = 10 : i32, message = "blf,fc->blc"}> : () -> ()
    %cst_9 = arith.constant dense<0.000000e+00> : vector<2x6x14xf32>
    %11 = tpu.matmul %9, %10, %cst_9 {dimension_numbers = #tpu.dot_dimension_numbers<[2], [0], [0, 1], [1], [0, 0, 0, 1, 1, 1], [], []>} : vector<2x6x32xbf16>, vector<32x14xbf16>, vector<2x6x14xf32> -> vector<2x6x14xf32>
    "tpu.trace_stop"() : () -> ()
    %cst_10 = arith.constant 0.176776692 : f32
    %12 = vector.broadcast %cst_10 : f32 to vector<2x6x14xf32>
    %13 = arith.mulf %11, %12 : vector<2x6x14xf32>
    %c0_11 = arith.constant 0 : index
    %c0_12 = arith.constant 0 : index
    %c0_13 = arith.constant 0 : index
    %14 = vector.load %arg3[%c0_11, %c0_12, %c0_13] : memref<2x6x1xf32, #tpu.memory_space<vmem>>, vector<2x6x1xf32>
    %15 = vector.broadcast %14 : vector<2x6x1xf32> to vector<2x6x14xf32>
    %16 = arith.addf %13, %15 : vector<2x6x14xf32>
    %cst_14 = arith.constant dense<0xFF800000> : vector<2x14xf32>
    %17 = vector.multi_reduction <maximumf>, %16, %cst_14 [1] : vector<2x6x14xf32> to vector<2x14xf32>
    %c0_15 = arith.constant 0 : index
    %c0_16 = arith.constant 0 : index
    %c0_17 = arith.constant 0 : index
    %18 = vector.load %arg1[%c0_15, %c0_16, %c0_17] : memref<2x5x64xbf16, #tpu.memory_space<vmem>>, vector<2x5x64xbf16>
    %c0_18 = arith.constant 0 : index
    %c0_19 = arith.constant 0 : index
    %19 = vector.load %arg7[%c0_18, %c0_19] : memref<64x32xbf16, #tpu.memory_space<vmem>>, vector<64x32xbf16>
    "tpu.trace_start"() <{level = 10 : i32, message = "blk,kf->blf"}> : () -> ()
    %cst_20 = arith.constant dense<0.000000e+00> : vector<2x5x32xf32>
    %20 = tpu.matmul %18, %19, %cst_20 {dimension_numbers = #tpu.dot_dimension_numbers<[2], [0], [0, 1], [1], [0, 0, 0, 1, 1, 1], [], []>} : vector<2x5x64xbf16>, vector<64x32xbf16>, vector<2x5x32xf32> -> vector<2x5x32xf32>
    "tpu.trace_stop"() : () -> ()
    %c0_21 = arith.constant 0 : index
    %c0_22 = arith.constant 0 : index
    %21 = vector.load %arg10[%c0_21, %c0_22] : memref<1x32xf32, #tpu.memory_space<vmem>>, vector<1x32xf32>
    %22 = vector.shape_cast %21 : vector<1x32xf32> to vector<1x1x32xf32>
    %23 = vector.broadcast %22 : vector<1x1x32xf32> to vector<2x5x32xf32>
    %24 = arith.addf %20, %23 : vector<2x5x32xf32>
    %cst_23 = arith.constant 0.000000e+00 : f32
    %25 = vector.broadcast %cst_23 : f32 to vector<2x5x32xf32>
    %26 = arith.maximumf %24, %25 : vector<2x5x32xf32>
    %27 = arith.truncf %26 : vector<2x5x32xf32> to vector<2x5x32xbf16>
    %c0_24 = arith.constant 0 : index
    %c0_25 = arith.constant 0 : index
    %28 = vector.load %arg12[%c0_24, %c0_25] : memref<32x14xbf16, #tpu.memory_space<vmem>>, vector<32x14xbf16>
    "tpu.trace_start"() <{level = 10 : i32, message = "blf,fc->blc"}> : () -> ()
    %cst_26 = arith.constant dense<0.000000e+00> : vector<2x5x14xf32>
    %29 = tpu.matmul %27, %28, %cst_26 {dimension_numbers = #tpu.dot_dimension_numbers<[2], [0], [0, 1], [1], [0, 0, 0, 1, 1, 1], [], []>} : vector<2x5x32xbf16>, vector<32x14xbf16>, vector<2x5x14xf32> -> vector<2x5x14xf32>
    "tpu.trace_stop"() : () -> ()
    %cst_27 = arith.constant 0.176776692 : f32
    %30 = vector.broadcast %cst_27 : f32 to vector<2x5x14xf32>
    %31 = arith.mulf %29, %30 : vector<2x5x14xf32>
    %c0_28 = arith.constant 0 : index
    %c0_29 = arith.constant 0 : index
    %c0_30 = arith.constant 0 : index
    %32 = vector.load %arg4[%c0_28, %c0_29, %c0_30] : memref<2x5x1xf32, #tpu.memory_space<vmem>>, vector<2x5x1xf32>
    %33 = vector.broadcast %32 : vector<2x5x1xf32> to vector<2x5x14xf32>
    %34 = arith.addf %31, %33 : vector<2x5x14xf32>
    %cst_31 = arith.constant dense<0xFF800000> : vector<2x14xf32>
    %35 = vector.multi_reduction <maximumf>, %34, %cst_31 [1] : vector<2x5x14xf32> to vector<2x14xf32>
    %36 = arith.maximumf %17, %35 : vector<2x14xf32>
    %c0_32 = arith.constant 0 : index
    %c0_33 = arith.constant 0 : index
    %c0_34 = arith.constant 0 : index
    %37 = vector.load %arg2[%c0_32, %c0_33, %c0_34] : memref<2x4x80xbf16, #tpu.memory_space<vmem>>, vector<2x4x80xbf16>
    %c0_35 = arith.constant 0 : index
    %c0_36 = arith.constant 0 : index
    %38 = vector.load %arg8[%c0_35, %c0_36] : memref<80x32xbf16, #tpu.memory_space<vmem>>, vector<80x32xbf16>
    "tpu.trace_start"() <{level = 10 : i32, message = "blk,kf->blf"}> : () -> ()
    %cst_37 = arith.constant dense<0.000000e+00> : vector<2x4x32xf32>
    %39 = tpu.matmul %37, %38, %cst_37 {dimension_numbers = #tpu.dot_dimension_numbers<[2], [0], [0, 1], [1], [0, 0, 0, 1, 1, 1], [], []>} : vector<2x4x80xbf16>, vector<80x32xbf16>, vector<2x4x32xf32> -> vector<2x4x32xf32>
    "tpu.trace_stop"() : () -> ()
    %c0_38 = arith.constant 0 : index
    %c0_39 = arith.constant 0 : index
    %40 = vector.load %arg11[%c0_38, %c0_39] : memref<1x32xf32, #tpu.memory_space<vmem>>, vector<1x32xf32>
    %41 = vector.shape_cast %40 : vector<1x32xf32> to vector<1x1x32xf32>
    %42 = vector.broadcast %41 : vector<1x1x32xf32> to vector<2x4x32xf32>
    %43 = arith.addf %39, %42 : vector<2x4x32xf32>
    %cst_40 = arith.constant 0.000000e+00 : f32
    %44 = vector.broadcast %cst_40 : f32 to vector<2x4x32xf32>
    %45 = arith.maximumf %43, %44 : vector<2x4x32xf32>
    %46 = arith.truncf %45 : vector<2x4x32xf32> to vector<2x4x32xbf16>
    %c0_41 = arith.constant 0 : index
    %c0_42 = arith.constant 0 : index
    %47 = vector.load %arg12[%c0_41, %c0_42] : memref<32x14xbf16, #tpu.memory_space<vmem>>, vector<32x14xbf16>
    "tpu.trace_start"() <{level = 10 : i32, message = "blf,fc->blc"}> : () -> ()
    %cst_43 = arith.constant dense<0.000000e+00> : vector<2x4x14xf32>
    %48 = tpu.matmul %46, %47, %cst_43 {dimension_numbers = #tpu.dot_dimension_numbers<[2], [0], [0, 1], [1], [0, 0, 0, 1, 1, 1], [], []>} : vector<2x4x32xbf16>, vector<32x14xbf16>, vector<2x4x14xf32> -> vector<2x4x14xf32>
    "tpu.trace_stop"() : () -> ()
    %cst_44 = arith.constant 0.176776692 : f32
    %49 = vector.broadcast %cst_44 : f32 to vector<2x4x14xf32>
    %50 = arith.mulf %48, %49 : vector<2x4x14xf32>
    %c0_45 = arith.constant 0 : index
    %c0_46 = arith.constant 0 : index
    %c0_47 = arith.constant 0 : index
    %51 = vector.load %arg5[%c0_45, %c0_46, %c0_47] : memref<2x4x1xf32, #tpu.memory_space<vmem>>, vector<2x4x1xf32>
    %52 = vector.broadcast %51 : vector<2x4x1xf32> to vector<2x4x14xf32>
    %53 = arith.addf %50, %52 : vector<2x4x14xf32>
    %cst_48 = arith.constant dense<0xFF800000> : vector<2x14xf32>
    %54 = vector.multi_reduction <maximumf>, %53, %cst_48 [1] : vector<2x4x14xf32> to vector<2x14xf32>
    %55 = arith.maximumf %36, %54 : vector<2x14xf32>
    %cst_49 = arith.constant 0.000000e+00 : f32
    %56 = vector.broadcast %cst_49 : f32 to vector<2x14xf32>
    %cst_50 = arith.constant 0.000000e+00 : f32
    %57 = vector.broadcast %cst_50 : f32 to vector<2x14x32xf32>
    %58 = vector.shape_cast %55 : vector<2x14xf32> to vector<2x1x14xf32>
    %59 = vector.broadcast %58 : vector<2x1x14xf32> to vector<2x6x14xf32>
    %60 = arith.subf %16, %59 : vector<2x6x14xf32>
    %61 = math.exp %60 : vector<2x6x14xf32>
    %cst_51 = arith.constant dense<0.000000e+00> : vector<2x14xf32>
    %62 = vector.multi_reduction <add>, %61, %cst_51 [1] : vector<2x6x14xf32> to vector<2x14xf32>
    %63 = arith.addf %56, %62 : vector<2x14xf32>
    %64 = tpu.transpose %61, [0, 2, 1] : vector<2x6x14xf32> -> vector<2x14x6xf32>
    %65 = arith.truncf %64 : vector<2x14x6xf32> to vector<2x14x6xbf16>
    "tpu.trace_start"() <{level = 10 : i32, message = "bcl,blf->bcf"}> : () -> ()
    %cst_52 = arith.constant dense<0.000000e+00> : vector<2x14x32xf32>
    %66 = tpu.matmul %65, %9, %cst_52 {dimension_numbers = #tpu.dot_dimension_numbers<[2], [1], [1], [2], [0, 0, 0, 1, 1, 2], [0], [0]>} : vector<2x14x6xbf16>, vector<2x6x32xbf16>, vector<2x14x32xf32> -> vector<2x14x32xf32>
    "tpu.trace_stop"() : () -> ()
    %67 = arith.addf %57, %66 : vector<2x14x32xf32>
    %68 = vector.shape_cast %55 : vector<2x14xf32> to vector<2x1x14xf32>
    %69 = vector.broadcast %68 : vector<2x1x14xf32> to vector<2x5x14xf32>
    %70 = arith.subf %34, %69 : vector<2x5x14xf32>
    %71 = math.exp %70 : vector<2x5x14xf32>
    %cst_53 = arith.constant dense<0.000000e+00> : vector<2x14xf32>
    %72 = vector.multi_reduction <add>, %71, %cst_53 [1] : vector<2x5x14xf32> to vector<2x14xf32>
    %73 = arith.addf %63, %72 : vector<2x14xf32>
    %74 = tpu.transpose %71, [0, 2, 1] : vector<2x5x14xf32> -> vector<2x14x5xf32>
    %75 = arith.truncf %74 : vector<2x14x5xf32> to vector<2x14x5xbf16>
    "tpu.trace_start"() <{level = 10 : i32, message = "bcl,blf->bcf"}> : () -> ()
    %cst_54 = arith.constant dense<0.000000e+00> : vector<2x14x32xf32>
    %76 = tpu.matmul %75, %27, %cst_54 {dimension_numbers = #tpu.dot_dimension_numbers<[2], [1], [1], [2], [0, 0, 0, 1, 1, 2], [0], [0]>} : vector<2x14x5xbf16>, vector<2x5x32xbf16>, vector<2x14x32xf32> -> vector<2x14x32xf32>
    "tpu.trace_stop"() : () -> ()
    %77 = arith.addf %67, %76 : vector<2x14x32xf32>
    %78 = vector.shape_cast %55 : vector<2x14xf32> to vector<2x1x14xf32>
    %79 = vector.broadcast %78 : vector<2x1x14xf32> to vector<2x4x14xf32>
    %80 = arith.subf %53, %79 : vector<2x4x14xf32>
    %81 = math.exp %80 : vector<2x4x14xf32>
    %cst_55 = arith.constant dense<0.000000e+00> : vector<2x14xf32>
    %82 = vector.multi_reduction <add>, %81, %cst_55 [1] : vector<2x4x14xf32> to vector<2x14xf32>
    %83 = arith.addf %73, %82 : vector<2x14xf32>
    %84 = tpu.transpose %81, [0, 2, 1] : vector<2x4x14xf32> -> vector<2x14x4xf32>
    %85 = arith.truncf %84 : vector<2x14x4xf32> to vector<2x14x4xbf16>
    "tpu.trace_start"() <{level = 10 : i32, message = "bcl,blf->bcf"}> : () -> ()
    %cst_56 = arith.constant dense<0.000000e+00> : vector<2x14x32xf32>
    %86 = tpu.matmul %85, %46, %cst_56 {dimension_numbers = #tpu.dot_dimension_numbers<[2], [1], [1], [2], [0, 0, 0, 1, 1, 2], [0], [0]>} : vector<2x14x4xbf16>, vector<2x4x32xbf16>, vector<2x14x32xf32> -> vector<2x14x32xf32>
    "tpu.trace_stop"() : () -> ()
    %87 = arith.addf %77, %86 : vector<2x14x32xf32>
    %88 = tpu.reciprocal %83 {approx = true} : vector<2x14xf32> -> vector<2x14xf32>
    %89 = vector.shape_cast %88 : vector<2x14xf32> to vector<2x14x1xf32>
    %90 = vector.broadcast %89 : vector<2x14x1xf32> to vector<2x14x32xf32>
    %91 = arith.mulf %87, %90 : vector<2x14x32xf32>
    %92 = vector.shape_cast %91 : vector<2x14x32xf32> to vector<2x14x32x1xf32>
    %c0_57 = arith.constant 0 : index
    %c0_58 = arith.constant 0 : index
    %c0_59 = arith.constant 0 : index
    %93 = vector.load %arg13[%c0_57, %c0_58, %c0_59] : memref<14x32x2xf32, #tpu.memory_space<vmem>>, vector<14x32x2xf32>
    %94 = vector.shape_cast %93 : vector<14x32x2xf32> to vector<1x14x32x2xf32>
    %95 = vector.broadcast %92 : vector<2x14x32x1xf32> to vector<2x14x32x2xf32>
    %96 = vector.broadcast %94 : vector<1x14x32x2xf32> to vector<2x14x32x2xf32>
    %97 = arith.mulf %95, %96 : vector<2x14x32x2xf32>
    %cst_60 = arith.constant dense<0.000000e+00> : vector<2x14x2xf32>
    %98 = vector.multi_reduction <add>, %97, %cst_60 [2] : vector<2x14x32x2xf32> to vector<2x14x2xf32>
    %c0_61 = arith.constant 0 : index
    %c0_62 = arith.constant 0 : index
    %99 = vector.load %arg14[%c0_61, %c0_62] : memref<14x2xf32, #tpu.memory_space<vmem>>, vector<14x2xf32>
    %100 = vector.shape_cast %99 : vector<14x2xf32> to vector<1x14x2xf32>
    %101 = vector.broadcast %100 : vector<1x14x2xf32> to vector<2x14x2xf32>
    %102 = arith.addf %98, %101 : vector<2x14x2xf32>
    %c0_63 = arith.constant 0 : index
    %c0_64 = arith.constant 0 : index
    %c0_65 = arith.constant 0 : index
    %103 = vector.load %arg15[%c0_63, %c0_64, %c0_65] : memref<2x14x2xf32, #tpu.memory_space<vmem>>, vector<2x14x2xf32>
    tpu.vector_store %arg15[%c0_63, %c0_64, %c0_65], %102 {strides = array<i32>} : memref<2x14x2xf32, #tpu.memory_space<vmem>>, vector<2x14x2xf32>,
    return
  }
}

</mosaic_0001>

<llo_original>
// kernel: cnn_attn_forward.1
$region0: #{cnn_attn_forward.1}
  #allocation0 [shape = 'u32[]', space=smem, size = 0x4, offset = 0x4, fixed_abs, tag = 'smem constant byte address 0x4 - core index']
  #allocation1 [shape = 'u32[72,128]{1,0:T(1,128)}', space=vmem, size = 0x9000, scoped, tag = 'internal scratch']
  %s0 = inlined_call_operand.vmem [shape: bf16[2,6,48], index: 0, kind: input, shape index: {}]
  %s1 = inlined_call_operand.vmem [shape: bf16[2,5,64], index: 1, kind: input, shape index: {}]
  %s2 = inlined_call_operand.vmem [shape: bf16[2,4,80], index: 2, kind: input, shape index: {}]
  %s3 = inlined_call_operand.vmem [shape: f32[2,6,1], index: 3, kind: input, shape index: {}]
  %s4 = inlined_call_operand.vmem [shape: f32[2,5,1], index: 4, kind: input, shape index: {}]
  %s5 = inlined_call_operand.vmem [shape: f32[2,4,1], index: 5, kind: input, shape index: {}]
  %s6 = inlined_call_operand.vmem [shape: bf16[48,32], index: 6, kind: input, shape index: {}]
  %s7 = inlined_call_operand.vmem [shape: bf16[64,32], index: 7, kind: input, shape index: {}]
  %s8 = inlined_call_operand.vmem [shape: bf16[80,32], index: 8, kind: input, shape index: {}]
  %s9 = inlined_call_operand.vmem [shape: f32[1,32], index: 9, kind: input, shape index: {}]
  %s10 = inlined_call_operand.vmem [shape: f32[1,32], index: 10, kind: input, shape index: {}]
  %s11 = inlined_call_operand.vmem [shape: f32[1,32], index: 11, kind: input, shape index: {}]
  %s12 = inlined_call_operand.vmem [shape: bf16[32,14], index: 12, kind: input, shape index: {}]
  %s13 = inlined_call_operand.hbm [shape: f32[14,32,2], index: 13, kind: input, shape index: {}]
  %s14 = inlined_call_operand.vmem [shape: f32[14,2], index: 14, kind: input, shape index: {}]
  %s15 = inlined_call_operand.vmem [shape: f32[2,14,2], index: 15, kind: output, shape index: {}]
  %s16 = sld [smem:[#allocation0]]
  $region74: #{cnn_attn_forward.1} parent=0
    _
  %s18 = ssub.s32 1, %s16
  %s19 = scalar_select 0, %s18, %s16
  $region1: #{cnn_attn_forward.1} parent=0
    #allocation2 [shape = 'u8[229376]{0}', space=vmem, size = 0x38000, scoped, tag = 'input window, operand 13, single buffered']
    #allocation3 [shape = 's32[1]{0}', space=sflag, size = 0x4, scoped, tag = 'scoped memory for cnn_attn_forward.1']
    %20 = vsyncpa [#allocation3], 0
    // Predicated region
    $region2: #{cnn_attn_forward.1} parent=1 // pred_check
      _
    $region3: #{cnn_attn_forward.1} parent=1 // pred_check_branch
      %22 = sbr.rel (0) target = $region5
    $region4: #{cnn_attn_forward.1} parent=1 // pred_region
      _
    $region5: #{cnn_attn_forward.1} parent=1 // pred_fallthru
      _
    // Predicated region
    $region6: #{cnn_attn_forward.1} parent=1 // pred_check
      _
    $region7: #{cnn_attn_forward.1} parent=1 // pred_check_branch
      %24 = sbr.rel (0) target = $region9
    $region8: #{cnn_attn_forward.1} parent=1 // pred_region
      _
    $region9: #{cnn_attn_forward.1} parent=1 // pred_fallthru
      _
    // Predicated region
    $region10: #{cnn_attn_forward.1} parent=1 // pred_check
      _
    $region11: #{cnn_attn_forward.1} parent=1 // pred_check_branch
      %26 = sbr.rel (0) target = $region13
    $region12: #{cnn_attn_forward.1} parent=1 // pred_region
      _
    $region13: #{cnn_attn_forward.1} parent=1 // pred_fallthru
      _
    // Predicated region
    $region14: #{cnn_attn_forward.1} parent=1 // pred_check
      _
    $region15: #{cnn_attn_forward.1} parent=1 // pred_check_branch
      %28 = sbr.rel (0) target = $region17
    $region16: #{cnn_attn_forward.1} parent=1 // pred_region
      _
    $region17: #{cnn_attn_forward.1} parent=1 // pred_fallthru
      _
    // Predicated region
    $region18: #{cnn_attn_forward.1} parent=1 // pred_check
      _
    $region19: #{cnn_attn_forward.1} parent=1 // pred_check_branch
      %30 = sbr.rel (0) target = $region21
    $region20: #{cnn_attn_forward.1} parent=1 // pred_region
      _
    $region21: #{cnn_attn_forward.1} parent=1 // pred_fallthru
      _
    // Predicated region
    $region22: #{cnn_attn_forward.1} parent=1 // pred_check
      _
    $region23: #{cnn_attn_forward.1} parent=1 // pred_check_branch
      %32 = sbr.rel (0) target = $region25
    $region24: #{cnn_attn_forward.1} parent=1 // pred_region
      _
    $region25: #{cnn_attn_forward.1} parent=1 // pred_fallthru
      _
    // Predicated region
    $region26: #{cnn_attn_forward.1} parent=1 // pred_check
      _
    $region27: #{cnn_attn_forward.1} parent=1 // pred_check_branch
      %34 = sbr.rel (0) target = $region29
    $region28: #{cnn_attn_forward.1} parent=1 // pred_region
      _
    $region29: #{cnn_attn_forward.1} parent=1 // pred_fallthru
      _
    // Predicated region
    $region30: #{cnn_attn_forward.1} parent=1 // pred_check
      _
    $region31: #{cnn_attn_forward.1} parent=1 // pred_check_branch
      %36 = sbr.rel (0) target = $region33
    $region32: #{cnn_attn_forward.1} parent=1 // pred_region
      _
    $region33: #{cnn_attn_forward.1} parent=1 // pred_fallthru
      _
    // Predicated region
    $region34: #{cnn_attn_forward.1} parent=1 // pred_check
      _
    $region35: #{cnn_attn_forward.1} parent=1 // pred_check_branch
      %38 = sbr.rel (0) target = $region37
    $region36: #{cnn_attn_forward.1} parent=1 // pred_region
      _
    $region37: #{cnn_attn_forward.1} parent=1 // pred_fallthru
      _
    // Predicated region
    $region38: #{cnn_attn_forward.1} parent=1 // pred_check
      _
    $region39: #{cnn_attn_forward.1} parent=1 // pred_check_branch
      %40 = sbr.rel (0) target = $region41
    $region40: #{cnn_attn_forward.1} parent=1 // pred_region
      _
    $region41: #{cnn_attn_forward.1} parent=1 // pred_fallthru
      _
    // Predicated region
    $region42: #{cnn_attn_forward.1} parent=1 // pred_check
      _
    $region43: #{cnn_attn_forward.1} parent=1 // pred_check_branch
      %42 = sbr.rel (0) target = $region45
    $region44: #{cnn_attn_forward.1} parent=1 // pred_region
      _
    $region45: #{cnn_attn_forward.1} parent=1 // pred_fallthru
      _
    // Predicated region
    $region46: #{cnn_attn_forward.1} parent=1 // pred_check
      _
    $region47: #{cnn_attn_forward.1} parent=1 // pred_check_branch
      %44 = sbr.rel (0) target = $region49
    $region48: #{cnn_attn_forward.1} parent=1 // pred_region
      _
    $region49: #{cnn_attn_forward.1} parent=1 // pred_fallthru
      _
    // Predicated region
    $region50: #{cnn_attn_forward.1} parent=1 // pred_check
      _
    $region51: #{cnn_attn_forward.1} parent=1 // pred_check_branch
      %46 = sbr.rel (0) target = $region53
    $region52: #{cnn_attn_forward.1} parent=1 // pred_region
      _
    $region53: #{cnn_attn_forward.1} parent=1 // pred_fallthru
      _
    // Predicated region
    $region54: #{cnn_attn_forward.1} parent=1 // pred_check
      _
    $region55: #{cnn_attn_forward.1} parent=1 // pred_check_branch
      %48 = sbr.rel (0) target = $region57
    $region56: #{cnn_attn_forward.1} parent=1 // pred_region
      %50 = vsyncadd [#allocation3], 0
      %s51 = sshll.u32 %s13, 4
      %s52 = int_to_ptr.hbm [resolvable:$true] %s51
      %s53 = sshll.u32 [#allocation2], 4
      %s54 = int_to_ptr.vmem [resolvable:$true] %s53
      %59 = dma.hbm_to_vmem [thread:$0]  %s52, 7168, %s54, [#allocation3], 128, 128, 8
    $region57: #{cnn_attn_forward.1} parent=1 // pred_fallthru
      _
    // Predicated region
    $region58: #{cnn_attn_forward.1} parent=1 // pred_check
      _
    $region59: #{cnn_attn_forward.1} parent=1 // pred_check_branch
      %61 = sbr.rel (0) target = $region61
    $region60: #{cnn_attn_forward.1} parent=1 // pred_region
      _
    $region61: #{cnn_attn_forward.1} parent=1 // pred_fallthru
      _
    // Predicated region
    $region62: #{cnn_attn_forward.1} parent=1 // pred_check
      _
    $region63: #{cnn_attn_forward.1} parent=1 // pred_check_branch
      %63 = sbr.rel (0) target = $region65
    $region64: #{cnn_attn_forward.1} parent=1 // pred_region
      %65 = dma.done [#allocation3], 7168
    $region65: #{cnn_attn_forward.1} parent=1 // pred_fallthru
      _
    %v67 = vld [vmem:[%s0] sm:$0x7]
    %v68 = vld [vmem:[%s0 + $0x4] sm:$0x7]
    %v69 = vld [vmem:[%s6] sm:$0xf]
    %v70 = vld [vmem:[%s6 + $0x4] sm:$0xf]
    %v71 = vld [vmem:[%s6 + $0x8] sm:$0xf]
    %v72 = vld [vmem:[%s6 + $0xc] sm:$0xf]
    %v73 = vld [vmem:[%s6 + $0x10] sm:$0xf]
    %v74 = vld [vmem:[%s6 + $0x14] sm:$0xf]
    %v75 = vld [vmem:[%s9] sm:$0x1]
    %v77 = vperm.slane %v75, 0
    %v80 = vrot.slane %v67, 3
    %v81 = vrot.slane %v68, 3
    %vm82 = vcmask 1040384
    %v85 = vsel %vm82, %v67, %v80
    %vm86 = vcmask 1041409
    %v87 = vsel %vm86, %v67, %v80
    %v89 = vrot.slane %v87, 1
    %vm90 = vcmask 1042434
    %v91 = vsel %vm90, %v67, %v80
    %v93 = vrot.slane %v91, 2
    %v96 = vsel %vm82, %v68, %v81
    %v97 = vsel %vm86, %v68, %v81
    %v99 = vrot.slane %v97, 1
    %v100 = vsel %vm90, %v68, %v81
    %v102 = vrot.slane %v100, 2
    %v103 = vrot.slane %v77, 2
    %v104 = vrot.slane %v77, 4
    %105 = vst [vmem:[#allocation1] ss:$9 sm:$0xff] %v85
    %s107 = scalar_lea.vmem [#allocation1], 1
    %108 = vst [vmem:[%s107] ss:$9 sm:$0xff] %v89
    %s110 = scalar_lea.vmem [#allocation1], 2
    %111 = vst [vmem:[%s110] ss:$9 sm:$0xff] %v93
    %s112 = scalar_lea.vmem [#allocation1], 3
    %113 = vst [vmem:[%s112] ss:$9 sm:$0xff] %v96
    %s115 = scalar_lea.vmem [#allocation1], 4
    %116 = vst [vmem:[%s115] ss:$9 sm:$0xff] %v99
    %s118 = scalar_lea.vmem [#allocation1], 5
    %119 = vst [vmem:[%s118] ss:$9 sm:$0xff] %v102
    %v120 = vld [vmem:[#allocation1] sm:$0xff]
    %v127 = vunpack.c.l.b16 %v69
    %v128 = vunpack.c.l.b16 %v70
    %v129 = vunpack.c.l.b16 %v71
    %v130 = vunpack.c.l.b16 %v72
    %v131 = vunpack.c.l.b16 %v73
    %v132 = vunpack.c.l.b16 %v74
    %v133 = vpack.c.b16 %v128, %v127
    %v134 = vpack.c.b16 %v130, %v129
    %v135 = vpack.c.b16 %v132, %v131
    %139 = vst [vmem:[#allocation1] ss:$4 sm:$0xff] %v77
    %s140 = scalar_lea.vmem [#allocation1], 1
    %141 = vst [vmem:[%s140] ss:$4 sm:$0xff] %v103
    %s142 = scalar_lea.vmem [#allocation1], 2
    %143 = vst [vmem:[%s142] ss:$4 sm:$0xff] %v104
    %s144 = scalar_lea.vmem [#allocation1], 3
    %145 = vst [vmem:[%s144] ss:$4 sm:$0xff] %v77
    %s146 = scalar_lea.vmem [#allocation1], 32
    %147 = vst [vmem:[%s146] ss:$4 sm:$0xff] %v103
    %s148 = scalar_lea.vmem [#allocation1], 33
    %149 = vst [vmem:[%s148] ss:$4 sm:$0xff] %v104
    %v150 = vld.sshfl [vmem:[#allocation1] sm:$0xff pattern:$0x73625140]
    %v151 = vld.sshfl [vmem:[#allocation1 + $0x20] sm:$0xff pattern:$0x73625140]
    %vm154 = vcmask 392192
    %v155 = vsel %vm154, %v120, 0
    %157 = vmatpush.bf16.msra.mxu0 0
    %158 = vmatpush.bf16.msra.mxu0 0
    %159 = vmatpush.bf16.msra.mxu0 0
    %160 = vmatpush.bf16.msra.mxu0 0
    %161 = vmatpush.bf16.msra.mxu0 0
    %162 = vmatpush.bf16.msra.mxu0 %v135
    %163 = vmatpush.bf16.msra.mxu0 %v134
    %164 = vmatpush.bf16.msra.mxu0 %v133
    %165 = vmatmul.bf16.gmra.mxu0 %v155
    %v166 = vpop.f32.mrf.mxu0
    %v167 = vadd.f32 %v150, %v166
    %v168 = vpop.f32.mrf.mxu0
    %v169 = vadd.f32 %v151, %v168
    %170 = vdwg.mxu0
    %v173 = vrot.slane %v167, 2
    %v174 = vrot.slane %v167, 4
    %v175 = vrot.slane %v167, 6
    %v176 = vrot.slane %v169, 2
    %v181 = vmax.f32 %v167, 0.0
    %v182 = vmax.f32 %v173, 0.0
    %v183 = vmax.f32 %v174, 0.0
    %v184 = vmax.f32 %v175, 0.0
    %v185 = vmax.f32 %v169, 0.0
    %v186 = vmax.f32 %v176, 0.0
    %193 = vst [vmem:[#allocation1] ss:$4 sm:$0xff] %v181
    %s194 = scalar_lea.vmem [#allocation1], 1
    %195 = vst [vmem:[%s194] ss:$4 sm:$0xff] %v182
    %s196 = scalar_lea.vmem [#allocation1], 2
    %197 = vst [vmem:[%s196] ss:$4 sm:$0xff] %v183
    %v198 = vld.sshfl [vmem:[#allocation1] sm:$0xff pattern:$0x73625140]
    %s199 = scalar_lea.vmem [#allocation1], 32
    %200 = vst [vmem:[%s199] ss:$4 sm:$0xff] %v184
    %s201 = scalar_lea.vmem [#allocation1], 33
    %202 = vst [vmem:[%s201] ss:$4 sm:$0xff] %v185
    %s203 = scalar_lea.vmem [#allocation1], 34
    %204 = vst [vmem:[%s203] ss:$4 sm:$0xff] %v186
    %v205 = vld.sshfl [vmem:[#allocation1 + $0x20] sm:$0xff pattern:$0x73625140]
    %v208 = vpack.c.bf16 %v198, %v198
    %v209 = vpack.c.bf16 %v205, %v205
    %v210 = vld [vmem:[%s12] sm:$0xf]
    %v211 = vld [vmem:[%s12 + $0x4] sm:$0xf]
    %v212 = vld [vmem:[%s12 + $0x8] sm:$0xf]
    %v213 = vld [vmem:[%s12 + $0xc] sm:$0xf]
    %v216 = vrot.slane %v208, 3
    %v217 = vrot.slane %v209, 3
    %v220 = vsel %vm82, %v208, %v216
    %v221 = vsel %vm86, %v208, %v216
    %v223 = vrot.slane %v221, 1
    %v224 = vsel %vm90, %v208, %v216
    %v226 = vrot.slane %v224, 2
    %v229 = vsel %vm82, %v209, %v217
    %v230 = vsel %vm86, %v209, %v217
    %v232 = vrot.slane %v230, 1
    %v233 = vsel %vm90, %v209, %v217
    %v235 = vrot.slane %v233, 2
    %236 = vst [vmem:[#allocation1] ss:$9 sm:$0xff] %v220
    %s238 = scalar_lea.vmem [#allocation1], 1
    %239 = vst [vmem:[%s238] ss:$9 sm:$0xff] %v223
    %s241 = scalar_lea.vmem [#allocation1], 2
    %242 = vst [vmem:[%s241] ss:$9 sm:$0xff] %v226
    %s243 = scalar_lea.vmem [#allocation1], 3
    %244 = vst [vmem:[%s243] ss:$9 sm:$0xff] %v229
    %s246 = scalar_lea.vmem [#allocation1], 4
    %247 = vst [vmem:[%s246] ss:$9 sm:$0xff] %v232
    %s249 = scalar_lea.vmem [#allocation1], 5
    %250 = vst [vmem:[%s249] ss:$9 sm:$0xff] %v235
    %v251 = vld [vmem:[#allocation1] sm:$0xff]
    %v256 = vunpack.c.l.b16 %v210
    %v257 = vunpack.c.l.b16 %v211
    %v258 = vunpack.c.l.b16 %v212
    %v259 = vunpack.c.l.b16 %v213
    %v260 = vpack.c.b16 %v257, %v256
    %v261 = vpack.c.b16 %v259, %v258
    %vm264 = vcmask 261120
    %v265 = vsel %vm264, %v251, 0
    %267 = vmatpush.bf16.msra.mxu0 0
    %268 = vmatpush.bf16.msra.mxu0 0
    %269 = vmatpush.bf16.msra.mxu0 0
    %270 = vmatpush.bf16.msra.mxu0 0
    %271 = vmatpush.bf16.msra.mxu0 0
    %272 = vmatpush.bf16.msra.mxu0 0
    %273 = vmatpush.bf16.msra.mxu0 %v261
    %274 = vmatpush.bf16.msra.mxu0 %v260
    %275 = vmatmul.bf16.gmra.mxu0 %v265
    %v276 = vpop.f32.mrf.mxu0
    %v277 = vadd.f32 0.0, %v276
    %v278 = vpop.f32.mrf.mxu0
    %v279 = vadd.f32 0.0, %v278
    %280 = vdwg.mxu0
    %v283 = vrot.slane %v277, 2
    %v284 = vrot.slane %v277, 4
    %v285 = vrot.slane %v277, 6
    %v286 = vrot.slane %v279, 2
    %v291 = vmul.f32 %v277, 0.17677669
    %v292 = vmul.f32 %v283, 0.17677669
    %v293 = vmul.f32 %v284, 0.17677669
    %v294 = vmul.f32 %v285, 0.17677669
    %v295 = vmul.f32 %v279, 0.17677669
    %v296 = vmul.f32 %v286, 0.17677669
    %v297 = vld [vmem:[%s3] sm:$0x3f]
    %v298 = vld [vmem:[%s3 + $0x8] sm:$0x3f]
    %300 = vset.pattern.permute.xlu0 0
    %301 = vperm.xlu0 %300, %v297
    %v302 = vpop.permute.xlu0 %301
    %304 = vset.pattern.permute.xlu0 0
    %305 = vperm.xlu0 %304, %v298
    %v306 = vpop.permute.xlu0 %305
    %v308 = vunpack.c.l.s4 269488144
    %v309 = vunpack.c.0.s8 %v308
    %v310 = vperm.slane %v302, %v309
    %v312 = vunpack.c.l.s4 842150450
    %v313 = vunpack.c.0.s8 %v312
    %v314 = vperm.slane %v302, %v313
    %v316 = vunpack.c.l.s4 1414812756
    %v317 = vunpack.c.0.s8 %v316
    %v318 = vperm.slane %v302, %v317
    %v320 = vunpack.c.l.s4 269488144
    %v321 = vunpack.c.0.s8 %v320
    %v322 = vperm.slane %v306, %v321
    %v324 = vunpack.c.l.s4 842150450
    %v325 = vunpack.c.0.s8 %v324
    %v326 = vperm.slane %v306, %v325
    %v328 = vunpack.c.l.s4 1414812756
    %v329 = vunpack.c.0.s8 %v328
    %v330 = vperm.slane %v306, %v329
    %v337 = vadd.f32 %v291, %v310
    %v338 = vadd.f32 %v292, %v314
    %v339 = vadd.f32 %v293, %v318
    %v340 = vadd.f32 %v294, %v322
    %v341 = vadd.f32 %v295, %v326
    %v342 = vadd.f32 %v296, %v330
    %349 = vst [vmem:[#allocation1] ss:$4 sm:$0xff] %v337
    %s350 = scalar_lea.vmem [#allocation1], 1
    %351 = vst [vmem:[%s350] ss:$4 sm:$0xff] %v338
    %s352 = scalar_lea.vmem [#allocation1], 2
    %353 = vst [vmem:[%s352] ss:$4 sm:$0xff] %v339
    %v354 = vld.sshfl [vmem:[#allocation1] sm:$0xff pattern:$0x73625140]
    %s355 = scalar_lea.vmem [#allocation1], 32
    %356 = vst [vmem:[%s355] ss:$4 sm:$0xff] %v340
    %s357 = scalar_lea.vmem [#allocation1], 33
    %358 = vst [vmem:[%s357] ss:$4 sm:$0xff] %v341
    %s359 = scalar_lea.vmem [#allocation1], 34
    %360 = vst [vmem:[%s359] ss:$4 sm:$0xff] %v342
    %v361 = vld.sshfl [vmem:[#allocation1 + $0x20] sm:$0xff pattern:$0x73625140]
    %vm364 = vcmask 111616
    %v365 = vsel %vm364, %v354, -inf
    %v366 = vrot.slane %v365, 4
    %v367 = vmax.f32 %v365, %v366
    %v368 = vrot.slane %v367, 2
    %v369 = vmax.f32 %v367, %v368
    %v370 = vrot.slane %v369, 1
    %v371 = vmax.f32 %v369, %v370
    %v372 = vsel %vm364, %v361, -inf
    %v373 = vrot.slane %v372, 4
    %v374 = vmax.f32 %v372, %v373
    %v375 = vrot.slane %v374, 2
    %v376 = vmax.f32 %v374, %v375
    %v377 = vrot.slane %v376, 1
    %v378 = vmax.f32 %v376, %v377
    %v379 = vld [vmem:[%s1] sm:$0x7]
    %v380 = vld [vmem:[%s1 + $0x4] sm:$0x7]
    %v381 = vld [vmem:[%s7] sm:$0xf]
    %v382 = vld [vmem:[%s7 + $0x4] sm:$0xf]
    %v383 = vld [vmem:[%s7 + $0x8] sm:$0xf]
    %v384 = vld [vmem:[%s7 + $0xc] sm:$0xf]
    %v385 = vld [vmem:[%s7 + $0x10] sm:$0xf]
    %v386 = vld [vmem:[%s7 + $0x14] sm:$0xf]
    %v387 = vld [vmem:[%s7 + $0x18] sm:$0xf]
    %v388 = vld [vmem:[%s7 + $0x1c] sm:$0xf]
    %v389 = vld [vmem:[%s10] sm:$0x1]
    %v391 = vperm.slane %v389, 0
    %v394 = vrot.slane %v379, 3
    %v395 = vrot.slane %v380, 3
    %v398 = vsel %vm82, %v379, %v394
    %v400 = vsel %vm86, %v379, %v394
    %v402 = vrot.slane %v400, 1
    %v403 = vsel %vm90, %v379, %v394
    %v405 = vrot.slane %v403, 2
    %v408 = vsel %vm82, %v380, %v395
    %v410 = vsel %vm86, %v380, %v395
    %v412 = vrot.slane %v410, 1
    %v413 = vsel %vm90, %v380, %v395
    %v415 = vrot.slane %v413, 2
    %v416 = vunpack.i.l.s16 %v398
    %v417 = vunpack.i.h.s16 %v398
    %v418 = vunpack.i.l.s16 %v402
    %v419 = vunpack.i.h.s16 %v402
    %v420 = vunpack.i.l.s16 %v405
    %v421 = vunpack.i.l.s16 %v408
    %v422 = vunpack.i.h.s16 %v408
    %v423 = vunpack.i.l.s16 %v412
    %v424 = vunpack.i.h.s16 %v412
    %v425 = vunpack.i.l.s16 %v415
    %v426 = vrot.slane %v391, 1
    %v427 = vrot.slane %v391, 2
    %v428 = vrot.slane %v391, 3
    %v429 = vrot.slane %v391, 4
    %v430 = vpack.i.b16 %v417, %v416
    %v431 = vpack.i.b16 %v419, %v418
    %v432 = vpack.i.b16 %v421, %v420
    %v433 = vpack.i.b16 %v423, %v422
    %v434 = vpack.i.b16 %v425, %v424
    %436 = vst [vmem:[#allocation1] ss:$9 sm:$0xff] %v430
    %s438 = scalar_lea.vmem [#allocation1], 1
    %439 = vst [vmem:[%s438] ss:$9 sm:$0xff] %v431
    %s441 = scalar_lea.vmem [#allocation1], 2
    %442 = vst [vmem:[%s441] ss:$9 sm:$0xff] %v432
    %s444 = scalar_lea.vmem [#allocation1], 3
    %445 = vst [vmem:[%s444] ss:$9 sm:$0xff] %v433
    %s447 = scalar_lea.vmem [#allocation1], 4
    %448 = vst [vmem:[%s447] ss:$9 sm:$0xff] %v434
    %v449 = vld [vmem:[#allocation1] sm:$0xff]
    %v458 = vunpack.c.l.b16 %v381
    %v459 = vunpack.c.l.b16 %v382
    %v460 = vunpack.c.l.b16 %v383
    %v461 = vunpack.c.l.b16 %v384
    %v462 = vunpack.c.l.b16 %v385
    %v463 = vunpack.c.l.b16 %v386
    %v464 = vunpack.c.l.b16 %v387
    %v465 = vunpack.c.l.b16 %v388
    %v466 = vpack.c.b16 %v459, %v458
    %v467 = vpack.c.b16 %v461, %v460
    %v468 = vpack.c.b16 %v463, %v462
    %v469 = vpack.c.b16 %v465, %v464
    %474 = vst [vmem:[#allocation1] ss:$9 sm:$0xff] %v391
    %s475 = scalar_lea.vmem [#allocation1], 1
    %476 = vst [vmem:[%s475] ss:$9 sm:$0xff] %v426
    %s477 = scalar_lea.vmem [#allocation1], 2
    %478 = vst [vmem:[%s477] ss:$9 sm:$0xff] %v427
    %s479 = scalar_lea.vmem [#allocation1], 3
    %480 = vst [vmem:[%s479] ss:$9 sm:$0xff] %v428
    %s481 = scalar_lea.vmem [#allocation1], 4
    %482 = vst [vmem:[%s481] ss:$9 sm:$0xff] %v429
    %s483 = scalar_lea.vmem [#allocation1], 5
    %484 = vst [vmem:[%s483] ss:$9 sm:$0xff] %v391
    %s485 = scalar_lea.vmem [#allocation1], 6
    %486 = vst [vmem:[%s485] ss:$9 sm:$0xff] %v426
    %s487 = scalar_lea.vmem [#allocation1], 7
    %488 = vst [vmem:[%s487] ss:$9 sm:$0xff] %v427
    %v489 = vld [vmem:[#allocation1] sm:$0xff]
    %490 = vst [vmem:[#allocation1] ss:$9 sm:$0xff] %v428
    %491 = vst [vmem:[%s475] ss:$9 sm:$0xff] %v429
    %v492 = vld [vmem:[#allocation1] sm:$0xff]
    %vm495 = vcmask 523264
    %v496 = vsel %vm495, %v449, 0
    %498 = vmatpush.bf16.msra.mxu0 0
    %499 = vmatpush.bf16.msra.mxu0 0
    %500 = vmatpush.bf16.msra.mxu0 0
    %501 = vmatpush.bf16.msra.mxu0 0
    %502 = vmatpush.bf16.msra.mxu0 %v469
    %503 = vmatpush.bf16.msra.mxu0 %v468
    %504 = vmatpush.bf16.msra.mxu0 %v467
    %505 = vmatpush.bf16.msra.mxu0 %v466
    %506 = vmatmul.bf16.gmra.mxu0 %v496
    %v507 = vpop.f32.mrf.mxu0
    %v508 = vadd.f32 %v489, %v507
    %v509 = vpop.f32.mrf.mxu0
    %v510 = vadd.f32 %v492, %v509
    %511 = vdwg.mxu0
    %v514 = vrot.slane %v508, 1
    %v515 = vrot.slane %v508, 2
    %v516 = vrot.slane %v508, 3
    %v517 = vrot.slane %v508, 4
    %v518 = vrot.slane %v508, 5
    %v519 = vrot.slane %v508, 6
    %v520 = vrot.slane %v508, 7
    %v521 = vrot.slane %v510, 1
    %v530 = vmax.f32 %v508, 0.0
    %v531 = vmax.f32 %v514, 0.0
    %v532 = vmax.f32 %v515, 0.0
    %v533 = vmax.f32 %v516, 0.0
    %v534 = vmax.f32 %v517, 0.0
    %v535 = vmax.f32 %v518, 0.0
    %v536 = vmax.f32 %v519, 0.0
    %v537 = vmax.f32 %v520, 0.0
    %v538 = vmax.f32 %v510, 0.0
    %v539 = vmax.f32 %v521, 0.0
    %550 = vst [vmem:[#allocation1] ss:$9 sm:$0xff] %v530
    %s551 = scalar_lea.vmem [#allocation1], 1
    %552 = vst [vmem:[%s551] ss:$9 sm:$0xff] %v531
    %s553 = scalar_lea.vmem [#allocation1], 2
    %554 = vst [vmem:[%s553] ss:$9 sm:$0xff] %v532
    %s555 = scalar_lea.vmem [#allocation1], 3
    %556 = vst [vmem:[%s555] ss:$9 sm:$0xff] %v533
    %s557 = scalar_lea.vmem [#allocation1], 4
    %558 = vst [vmem:[%s557] ss:$9 sm:$0xff] %v534
    %v559 = vld [vmem:[#allocation1] sm:$0xff]
    %560 = vst [vmem:[#allocation1] ss:$9 sm:$0xff] %v535
    %561 = vst [vmem:[%s551] ss:$9 sm:$0xff] %v536
    %562 = vst [vmem:[%s553] ss:$9 sm:$0xff] %v537
    %563 = vst [vmem:[%s555] ss:$9 sm:$0xff] %v538
    %564 = vst [vmem:[%s557] ss:$9 sm:$0xff] %v539
    %v565 = vld [vmem:[#allocation1] sm:$0xff]
    %v568 = vpack.c.bf16 %v559, %v559
    %v569 = vpack.c.bf16 %v565, %v565
    %v570 = vld [vmem:[%s12] sm:$0xf]
    %v571 = vld [vmem:[%s12 + $0x4] sm:$0xf]
    %v572 = vld [vmem:[%s12 + $0x8] sm:$0xf]
    %v573 = vld [vmem:[%s12 + $0xc] sm:$0xf]
    %v576 = vrot.slane %v568, 3
    %v577 = vrot.slane %v569, 3
    %v580 = vsel %vm82, %v568, %v576
    %v582 = vsel %vm86, %v568, %v576
    %v584 = vrot.slane %v582, 1
    %v585 = vsel %vm90, %v568, %v576
    %v587 = vrot.slane %v585, 2
    %v590 = vsel %vm82, %v569, %v577
    %v592 = vsel %vm86, %v569, %v577
    %v594 = vrot.slane %v592, 1
    %v595 = vsel %vm90, %v569, %v577
    %v597 = vrot.slane %v595, 2
    %v598 = vunpack.i.l.s16 %v580
    %v599 = vunpack.i.h.s16 %v580
    %v600 = vunpack.i.l.s16 %v584
    %v601 = vunpack.i.h.s16 %v584
    %v602 = vunpack.i.l.s16 %v587
    %v603 = vunpack.i.l.s16 %v590
    %v604 = vunpack.i.h.s16 %v590
    %v605 = vunpack.i.l.s16 %v594
    %v606 = vunpack.i.h.s16 %v594
    %v607 = vunpack.i.l.s16 %v597
    %v608 = vpack.i.b16 %v599, %v598
    %v609 = vpack.i.b16 %v601, %v600
    %v610 = vpack.i.b16 %v603, %v602
    %v611 = vpack.i.b16 %v605, %v604
    %v612 = vpack.i.b16 %v607, %v606
    %614 = vst [vmem:[#allocation1] ss:$9 sm:$0xff] %v608
    %s616 = scalar_lea.vmem [#allocation1], 1
    %617 = vst [vmem:[%s616] ss:$9 sm:$0xff] %v609
    %s619 = scalar_lea.vmem [#allocation1], 2
    %620 = vst [vmem:[%s619] ss:$9 sm:$0xff] %v610
    %s622 = scalar_lea.vmem [#allocation1], 3
    %623 = vst [vmem:[%s622] ss:$9 sm:$0xff] %v611
    %s625 = scalar_lea.vmem [#allocation1], 4
    %626 = vst [vmem:[%s625] ss:$9 sm:$0xff] %v612
    %v627 = vld [vmem:[#allocation1] sm:$0xff]
    %v632 = vunpack.c.l.b16 %v570
    %v633 = vunpack.c.l.b16 %v571
    %v634 = vunpack.c.l.b16 %v572
    %v635 = vunpack.c.l.b16 %v573
    %v636 = vpack.c.b16 %v633, %v632
    %v637 = vpack.c.b16 %v635, %v634
    %v640 = vsel %vm264, %v627, 0
    %642 = vmatpush.bf16.msra.mxu0 0
    %643 = vmatpush.bf16.msra.mxu0 0
    %644 = vmatpush.bf16.msra.mxu0 0
    %645 = vmatpush.bf16.msra.mxu0 0
    %646 = vmatpush.bf16.msra.mxu0 0
    %647 = vmatpush.bf16.msra.mxu0 0
    %648 = vmatpush.bf16.msra.mxu0 %v637
    %649 = vmatpush.bf16.msra.mxu0 %v636
    %650 = vmatmul.bf16.gmra.mxu0 %v640
    %v651 = vpop.f32.mrf.mxu0
    %v652 = vadd.f32 0.0, %v651
    %v653 = vpop.f32.mrf.mxu0
    %v654 = vadd.f32 0.0, %v653
    %655 = vdwg.mxu0
    %v658 = vrot.slane %v652, 1
    %v659 = vrot.slane %v652, 2
    %v660 = vrot.slane %v652, 3
    %v661 = vrot.slane %v652, 4
    %v662 = vrot.slane %v652, 5
    %v663 = vrot.slane %v652, 6
    %v664 = vrot.slane %v652, 7
    %v665 = vrot.slane %v654, 1
    %v674 = vmul.f32 %v652, 0.17677669
    %v675 = vmul.f32 %v658, 0.17677669
    %v676 = vmul.f32 %v659, 0.17677669
    %v677 = vmul.f32 %v660, 0.17677669
    %v678 = vmul.f32 %v661, 0.17677669
    %v679 = vmul.f32 %v662, 0.17677669
    %v680 = vmul.f32 %v663, 0.17677669
    %v681 = vmul.f32 %v664, 0.17677669
    %v682 = vmul.f32 %v654, 0.17677669
    %v683 = vmul.f32 %v665, 0.17677669
    %v684 = vld [vmem:[%s4] sm:$0x1f]
    %v685 = vld [vmem:[%s4 + $0x8] sm:$0x1f]
    %687 = vset.pattern.permute.xlu0 0
    %688 = vperm.xlu0 %687, %v684
    %v689 = vpop.permute.xlu0 %688
    %691 = vset.pattern.permute.xlu0 0
    %692 = vperm.xlu0 %691, %v685
    %v693 = vpop.permute.xlu0 %692
    %v694 = vperm.slane %v689, 0
    %v695 = vperm.slane %v689, 1
    %v696 = vperm.slane %v689, 2
    %v697 = vperm.slane %v689, 3
    %v698 = vperm.slane %v689, 4
    %v699 = vperm.slane %v693, 0
    %v700 = vperm.slane %v693, 1
    %v701 = vperm.slane %v693, 2
    %v702 = vperm.slane %v693, 3
    %v703 = vperm.slane %v693, 4
    %v714 = vadd.f32 %v674, %v694
    %v715 = vadd.f32 %v675, %v695
    %v716 = vadd.f32 %v676, %v696
    %v717 = vadd.f32 %v677, %v697
    %v718 = vadd.f32 %v678, %v698
    %v719 = vadd.f32 %v679, %v699
    %v720 = vadd.f32 %v680, %v700
    %v721 = vadd.f32 %v681, %v701
    %v722 = vadd.f32 %v682, %v702
    %v723 = vadd.f32 %v683, %v703
    %734 = vst [vmem:[#allocation1] ss:$9 sm:$0xff] %v714
    %s735 = scalar_lea.vmem [#allocation1], 1
    %736 = vst [vmem:[%s735] ss:$9 sm:$0xff] %v715
    %s737 = scalar_lea.vmem [#allocation1], 2
    %738 = vst [vmem:[%s737] ss:$9 sm:$0xff] %v716
    %s739 = scalar_lea.vmem [#allocation1], 3
    %740 = vst [vmem:[%s739] ss:$9 sm:$0xff] %v717
    %s741 = scalar_lea.vmem [#allocation1], 4
    %742 = vst [vmem:[%s741] ss:$9 sm:$0xff] %v718
    %v743 = vld [vmem:[#allocation1] sm:$0xff]
    %744 = vst [vmem:[#allocation1] ss:$9 sm:$0xff] %v719
    %745 = vst [vmem:[%s735] ss:$9 sm:$0xff] %v720
    %746 = vst [vmem:[%s737] ss:$9 sm:$0xff] %v721
    %747 = vst [vmem:[%s739] ss:$9 sm:$0xff] %v722
    %748 = vst [vmem:[%s741] ss:$9 sm:$0xff] %v723
    %v749 = vld [vmem:[#allocation1] sm:$0xff]
    %vm752 = vcmask 110592
    %v753 = vsel %vm752, %v743, -inf
    %v754 = vrot.slane %v753, 4
    %v755 = vmax.f32 %v753, %v754
    %v756 = vrot.slane %v755, 2
    %v757 = vmax.f32 %v755, %v756
    %v758 = vrot.slane %v757, 1
    %v759 = vmax.f32 %v757, %v758
    %v760 = vsel %vm752, %v749, -inf
    %v761 = vrot.slane %v760, 4
    %v762 = vmax.f32 %v760, %v761
    %v763 = vrot.slane %v762, 2
    %v764 = vmax.f32 %v762, %v763
    %v765 = vrot.slane %v764, 1
    %v766 = vmax.f32 %v764, %v765
    %v767 = vmax.f32 %v371, %v759
    %v768 = vmax.f32 %v378, %v766
    %v769 = vld [vmem:[%s2] sm:$0x3]
    %v770 = vld [vmem:[%s2 + $0x2] sm:$0x3]
    %v771 = vld [vmem:[%s8] sm:$0xf]
    %v772 = vld [vmem:[%s8 + $0x4] sm:$0xf]
    %v773 = vld [vmem:[%s8 + $0x8] sm:$0xf]
    %v774 = vld [vmem:[%s8 + $0xc] sm:$0xf]
    %v775 = vld [vmem:[%s8 + $0x10] sm:$0xf]
    %v776 = vld [vmem:[%s8 + $0x14] sm:$0xf]
    %v777 = vld [vmem:[%s8 + $0x18] sm:$0xf]
    %v778 = vld [vmem:[%s8 + $0x1c] sm:$0xf]
    %v779 = vld [vmem:[%s8 + $0x20] sm:$0xf]
    %v780 = vld [vmem:[%s8 + $0x24] sm:$0xf]
    %v781 = vld [vmem:[%s11] sm:$0x1]
    %v783 = vperm.slane %v781, 0
    %785 = vst [vmem:[#allocation1] ss:$4 sm:$0xff] %v769
    %s787 = scalar_lea.vmem [#allocation1], 1
    %788 = vst [vmem:[%s787] ss:$4 sm:$0xff] %v770
    %v789 = vld.sshfl [vmem:[#allocation1] sm:$0xff pattern:$0x73625140]
    %v800 = vunpack.c.l.b16 %v771
    %v801 = vunpack.c.l.b16 %v772
    %v802 = vunpack.c.l.b16 %v773
    %v803 = vunpack.c.l.b16 %v774
    %v804 = vunpack.c.l.b16 %v775
    %v805 = vunpack.c.l.b16 %v776
    %v806 = vunpack.c.l.b16 %v777
    %v807 = vunpack.c.l.b16 %v778
    %v808 = vunpack.c.l.b16 %v779
    %v809 = vunpack.c.l.b16 %v780
    %v810 = vpack.c.b16 %v801, %v800
    %v811 = vpack.c.b16 %v803, %v802
    %v812 = vpack.c.b16 %v805, %v804
    %v813 = vpack.c.b16 %v807, %v806
    %v814 = vpack.c.b16 %v809, %v808
    %820 = vst [vmem:[#allocation1] ss:$2 sm:$0xff] %v783
    %s821 = scalar_lea.vmem [#allocation1], 1
    %822 = vst [vmem:[%s821] ss:$2 sm:$0xff] %v783
    %v823 = vld.sshfl [vmem:[#allocation1] sm:$0xff pattern:$0x75316420]
    %vm825 = vcmask 654336
    %v826 = vsel %vm825, %v789, 0
    %828 = vmatpush.bf16.msra.mxu0 0
    %829 = vmatpush.bf16.msra.mxu0 0
    %830 = vmatpush.bf16.msra.mxu0 0
    %831 = vmatpush.bf16.msra.mxu0 %v814
    %832 = vmatpush.bf16.msra.mxu0 %v813
    %833 = vmatpush.bf16.msra.mxu0 %v812
    %834 = vmatpush.bf16.msra.mxu0 %v811
    %835 = vmatpush.bf16.msra.mxu0 %v810
    %836 = vmatmul.bf16.gmra.mxu0 %v826
    %v837 = vpop.f32.mrf.mxu0
    %v838 = vadd.f32 %v823, %v837
    %v839 = vpop.f32.mrf.mxu0
    %840 = vdwg.mxu0
    %v842 = vrot.slane %v838, 4
    %v844 = vmax.f32 %v838, 0.0
    %v845 = vmax.f32 %v842, 0.0
    %v846 = vpack.c.bf16 %v844, %v844
    %v847 = vpack.c.bf16 %v845, %v845
    %v848 = vld [vmem:[%s12] sm:$0xf]
    %v849 = vld [vmem:[%s12 + $0x4] sm:$0xf]
    %v850 = vld [vmem:[%s12 + $0x8] sm:$0xf]
    %v851 = vld [vmem:[%s12 + $0xc] sm:$0xf]
    %853 = vst [vmem:[#allocation1] ss:$4 sm:$0xff] %v846
    %s855 = scalar_lea.vmem [#allocation1], 1
    %856 = vst [vmem:[%s855] ss:$4 sm:$0xff] %v847
    %v857 = vld.sshfl [vmem:[#allocation1] sm:$0xff pattern:$0x73625140]
    %v862 = vunpack.c.l.b16 %v848
    %v863 = vunpack.c.l.b16 %v849
    %v864 = vunpack.c.l.b16 %v850
    %v865 = vunpack.c.l.b16 %v851
    %v866 = vpack.c.b16 %v863, %v862
    %v867 = vpack.c.b16 %v865, %v864
    %v870 = vsel %vm264, %v857, 0
    %872 = vmatpush.bf16.msra.mxu0 0
    %873 = vmatpush.bf16.msra.mxu0 0
    %874 = vmatpush.bf16.msra.mxu0 0
    %875 = vmatpush.bf16.msra.mxu0 0
    %876 = vmatpush.bf16.msra.mxu0 0
    %877 = vmatpush.bf16.msra.mxu0 0
    %878 = vmatpush.bf16.msra.mxu0 %v867
    %879 = vmatpush.bf16.msra.mxu0 %v866
    %880 = vmatmul.bf16.gmra.mxu0 %v870
    %v881 = vpop.f32.mrf.mxu0
    %v882 = vadd.f32 0.0, %v881
    %v883 = vpop.f32.mrf.mxu0
    %884 = vdwg.mxu0
    %v886 = vrot.slane %v882, 4
    %v888 = vmul.f32 %v882, 0.17677669
    %v889 = vmul.f32 %v886, 0.17677669
    %v890 = vld [vmem:[%s5] sm:$0xf]
    %v891 = vld [vmem:[%s5 + $0x4] sm:$0xf]
    %893 = vset.pattern.permute.xlu0 0
    %894 = vperm.xlu0 %893, %v890
    %v895 = vpop.permute.xlu0 %894
    %898 = vset.pattern.permute.xlu0 0
    %899 = vperm.xlu0 %898, %v891
    %v900 = vpop.permute.xlu0 %899
    %v902 = vadd.f32 %v888, %v895
    %v903 = vadd.f32 %v889, %v900
    %vm904 = vcmask 109568
    %v905 = vsel %vm904, %v902, -inf
    %v906 = vrot.slane %v905, 4
    %v907 = vmax.f32 %v905, %v906
    %v908 = vrot.slane %v907, 2
    %v909 = vmax.f32 %v907, %v908
    %v910 = vrot.slane %v909, 1
    %v911 = vmax.f32 %v909, %v910
    %v912 = vsel %vm904, %v903, -inf
    %v913 = vrot.slane %v912, 4
    %v914 = vmax.f32 %v912, %v913
    %v915 = vrot.slane %v914, 2
    %v916 = vmax.f32 %v914, %v915
    %v917 = vrot.slane %v916, 1
    %v918 = vmax.f32 %v916, %v917
    %v919 = vmax.f32 %v767, %v911
    %v920 = vmax.f32 %v768, %v918
    %v923 = vrot.slane %v919, 2
    %v924 = vrot.slane %v919, 4
    %v925 = vrot.slane %v920, 2
    %v926 = vrot.slane %v920, 4
    %v931 = vsub.f32 %v337, %v919
    %v932 = vsub.f32 %v338, %v923
    %v933 = vsub.f32 %v339, %v924
    %v934 = vsub.f32 %v340, %v920
    %v935 = vsub.f32 %v341, %v925
    %v936 = vsub.f32 %v342, %v926
    %v937 = vmul.f32 %v931, 1.442695
    %v938 = vpow.pop %v937
    %v939 = vmul.f32 %v932, 1.442695
    %v940 = vpow.pop %v939
    %v941 = vmul.f32 %v933, 1.442695
    %v942 = vpow.pop %v941
    %v943 = vmul.f32 %v934, 1.442695
    %v944 = vpow.pop %v943
    %v945 = vmul.f32 %v935, 1.442695
    %v946 = vpow.pop %v945
    %v947 = vmul.f32 %v936, 1.442695
    %v948 = vpow.pop %v947
    %955 = vst [vmem:[#allocation1] ss:$4 sm:$0xff] %v938
    %s956 = scalar_lea.vmem [#allocation1], 1
    %957 = vst [vmem:[%s956] ss:$4 sm:$0xff] %v940
    %s958 = scalar_lea.vmem [#allocation1], 2
    %959 = vst [vmem:[%s958] ss:$4 sm:$0xff] %v942
    %v960 = vld.sshfl [vmem:[#allocation1] sm:$0xff pattern:$0x73625140]
    %s961 = scalar_lea.vmem [#allocation1], 32
    %962 = vst [vmem:[%s961] ss:$4 sm:$0xff] %v944
    %s963 = scalar_lea.vmem [#allocation1], 33
    %964 = vst [vmem:[%s963] ss:$4 sm:$0xff] %v946
    %s965 = scalar_lea.vmem [#allocation1], 34
    %966 = vst [vmem:[%s965] ss:$4 sm:$0xff] %v948
    %v967 = vld.sshfl [vmem:[#allocation1 + $0x20] sm:$0xff pattern:$0x73625140]
    %v970 = vsel %vm364, %v960, 0.0
    %v971 = vrot.slane %v970, 4
    %v972 = vadd.f32 %v970, %v971
    %v973 = vrot.slane %v972, 2
    %v974 = vadd.f32 %v972, %v973
    %v975 = vrot.slane %v974, 1
    %v976 = vadd.f32 %v974, %v975
    %v977 = vsel %vm364, %v967, 0.0
    %v978 = vrot.slane %v977, 4
    %v979 = vadd.f32 %v977, %v978
    %v980 = vrot.slane %v979, 2
    %v981 = vadd.f32 %v979, %v980
    %v982 = vrot.slane %v981, 1
    %v983 = vadd.f32 %v981, %v982
    %v984 = vadd.f32 %v976, 0.0
    %v985 = vadd.f32 %v983, 0.0
    %986 = vst [vmem:[#allocation1] ss:$4 sm:$0xff] %v938
    %s987 = scalar_lea.vmem [#allocation1], 1
    %988 = vst [vmem:[%s987] ss:$4 sm:$0xff] %v940
    %s989 = scalar_lea.vmem [#allocation1], 2
    %990 = vst [vmem:[%s989] ss:$4 sm:$0xff] %v942
    %v991 = vld.sshfl [vmem:[#allocation1] sm:$0xff pattern:$0x73625140]
    %s992 = scalar_lea.vmem [#allocation1], 32
    %993 = vst [vmem:[%s992] ss:$4 sm:$0xff] %v944
    %s994 = scalar_lea.vmem [#allocation1], 33
    %995 = vst [vmem:[%s994] ss:$4 sm:$0xff] %v946
    %s996 = scalar_lea.vmem [#allocation1], 34
    %997 = vst [vmem:[%s996] ss:$4 sm:$0xff] %v948
    %v998 = vld.sshfl [vmem:[#allocation1 + $0x20] sm:$0xff pattern:$0x73625140]
    %1001 = vxpose.xlu0.b32.start [1/16] %v991, 128
    %1002 = vxpose.xlu0.b32.cont [2/16] 0.0, 128
    %1003 = vxpose.xlu0.b32.cont [3/16] 0.0, 128
    %1004 = vxpose.xlu0.b32.cont [4/16] 0.0, 128
    %1005 = vxpose.xlu0.b32.cont [5/16] 0.0, 128
    %1006 = vxpose.xlu0.b32.cont [6/16] 0.0, 128
    %1007 = vxpose.xlu0.b32.cont [7/16] 0.0, 128
    %1008 = vxpose.xlu0.b32.cont [8/16] 0.0, 128
    %1009 = vxpose.xlu0.b32.cont [9/16] 0.0, 128
    %1010 = vxpose.xlu0.b32.cont [10/16] 0.0, 128
    %1011 = vxpose.xlu0.b32.cont [11/16] 0.0, 128
    %1012 = vxpose.xlu0.b32.cont [12/16] 0.0, 128
    %1013 = vxpose.xlu0.b32.cont [13/16] 0.0, 128
    %1014 = vxpose.xlu0.b32.cont [14/16] 0.0, 128
    %1015 = vxpose.xlu0.b32.cont [15/16] 0.0, 128
    %1016 = vxpose.xlu0.b32.end [16/16] 0.0, 128
    %v1017 = vpop.trf.xlu0
    %v1018 = vpop.trf.xlu0
    %v1019 = vpop.trf.xlu0
    %v1020 = vpop.trf.xlu0
    %v1021 = vpop.trf.xlu0
    %v1022 = vpop.trf.xlu0
    %v1023 = vpop.trf.xlu0
    %v1024 = vpop.trf.xlu0
    %v1025 = vpop.trf.xlu0
    %v1026 = vpop.trf.xlu0
    %v1027 = vpop.trf.xlu0
    %v1028 = vpop.trf.xlu0
    %v1029 = vpop.trf.xlu0
    %v1030 = vpop.trf.xlu0
    %v1031 = vpop.trf.xlu0
    %v1032 = vpop.trf.xlu0
    %1033 = vxpose.xlu0.b32.start [1/16] %v998, 128
    %1034 = vxpose.xlu0.b32.cont [2/16] 0.0, 128
    %1035 = vxpose.xlu0.b32.cont [3/16] 0.0, 128
    %1036 = vxpose.xlu0.b32.cont [4/16] 0.0, 128
    %1037 = vxpose.xlu0.b32.cont [5/16] 0.0, 128
    %1038 = vxpose.xlu0.b32.cont [6/16] 0.0, 128
    %1039 = vxpose.xlu0.b32.cont [7/16] 0.0, 128
    %1040 = vxpose.xlu0.b32.cont [8/16] 0.0, 128
    %1041 = vxpose.xlu0.b32.cont [9/16] 0.0, 128
    %1042 = vxpose.xlu0.b32.cont [10/16] 0.0, 128
    %1043 = vxpose.xlu0.b32.cont [11/16] 0.0, 128
    %1044 = vxpose.xlu0.b32.cont [12/16] 0.0, 128
    %1045 = vxpose.xlu0.b32.cont [13/16] 0.0, 128
    %1046 = vxpose.xlu0.b32.cont [14/16] 0.0, 128
    %1047 = vxpose.xlu0.b32.cont [15/16] 0.0, 128
    %1048 = vxpose.xlu0.b32.end [16/16] 0.0, 128
    %v1049 = vpop.trf.xlu0
    %v1050 = vpop.trf.xlu0
    %v1051 = vpop.trf.xlu0
    %v1052 = vpop.trf.xlu0
    %v1053 = vpop.trf.xlu0
    %v1054 = vpop.trf.xlu0
    %v1055 = vpop.trf.xlu0
    %v1056 = vpop.trf.xlu0
    %v1057 = vpop.trf.xlu0
    %v1058 = vpop.trf.xlu0
    %v1059 = vpop.trf.xlu0
    %v1060 = vpop.trf.xlu0
    %v1061 = vpop.trf.xlu0
    %v1062 = vpop.trf.xlu0
    %v1063 = vpop.trf.xlu0
    %v1064 = vpop.trf.xlu0
    %v1065 = vpack.c.bf16 %v1017, %v1017
    %v1066 = vpack.c.bf16 %v1018, %v1018
    %v1067 = vpack.c.bf16 %v1049, %v1049
    %v1068 = vpack.c.bf16 %v1050, %v1050
    %v1069 = vrot.slane %v919, 1
    %v1070 = vrot.slane %v919, 3
    %v1071 = vrot.slane %v920, 1
    %v1072 = vrot.slane %v920, 3
    %v1077 = vsub.f32 %v714, %v919
    %v1078 = vsub.f32 %v715, %v1069
    %v1079 = vsub.f32 %v716, %v923
    %v1080 = vsub.f32 %v717, %v1070
    %v1081 = vsub.f32 %v718, %v924
    %v1082 = vsub.f32 %v719, %v920
    %v1083 = vsub.f32 %v720, %v1071
    %v1084 = vsub.f32 %v721, %v925
    %v1085 = vsub.f32 %v722, %v1072
    %v1086 = vsub.f32 %v723, %v926
    %v1087 = vmul.f32 %v1077, 1.442695
    %v1088 = vpow.pop %v1087
    %v1089 = vmul.f32 %v1078, 1.442695
    %v1090 = vpow.pop %v1089
    %v1091 = vmul.f32 %v1079, 1.442695
    %v1092 = vpow.pop %v1091
    %v1093 = vmul.f32 %v1080, 1.442695
    %v1094 = vpow.pop %v1093
    %v1095 = vmul.f32 %v1081, 1.442695
    %v1096 = vpow.pop %v1095
    %v1097 = vmul.f32 %v1082, 1.442695
    %v1098 = vpow.pop %v1097
    %v1099 = vmul.f32 %v1083, 1.442695
    %v1100 = vpow.pop %v1099
    %v1101 = vmul.f32 %v1084, 1.442695
    %v1102 = vpow.pop %v1101
    %v1103 = vmul.f32 %v1085, 1.442695
    %v1104 = vpow.pop %v1103
    %v1105 = vmul.f32 %v1086, 1.442695
    %v1106 = vpow.pop %v1105
    %1117 = vst [vmem:[#allocation1] ss:$9 sm:$0xff] %v1088
    %s1118 = scalar_lea.vmem [#allocation1], 1
    %1119 = vst [vmem:[%s1118] ss:$9 sm:$0xff] %v1090
    %s1120 = scalar_lea.vmem [#allocation1], 2
    %1121 = vst [vmem:[%s1120] ss:$9 sm:$0xff] %v1092
    %s1122 = scalar_lea.vmem [#allocation1], 3
    %1123 = vst [vmem:[%s1122] ss:$9 sm:$0xff] %v1094
    %s1124 = scalar_lea.vmem [#allocation1], 4
    %1125 = vst [vmem:[%s1124] ss:$9 sm:$0xff] %v1096
    %v1126 = vld [vmem:[#allocation1] sm:$0xff]
    %1127 = vst [vmem:[#allocation1] ss:$9 sm:$0xff] %v1098
    %1128 = vst [vmem:[%s1118] ss:$9 sm:$0xff] %v1100
    %1129 = vst [vmem:[%s1120] ss:$9 sm:$0xff] %v1102
    %1130 = vst [vmem:[%s1122] ss:$9 sm:$0xff] %v1104
    %1131 = vst [vmem:[%s1124] ss:$9 sm:$0xff] %v1106
    %v1132 = vld [vmem:[#allocation1] sm:$0xff]
    %v1135 = vsel %vm752, %v1126, 0.0
    %v1136 = vrot.slane %v1135, 4
    %v1137 = vadd.f32 %v1135, %v1136
    %v1138 = vrot.slane %v1137, 2
    %v1139 = vadd.f32 %v1137, %v1138
    %v1140 = vrot.slane %v1139, 1
    %v1141 = vadd.f32 %v1139, %v1140
    %v1142 = vsel %vm752, %v1132, 0.0
    %v1143 = vrot.slane %v1142, 4
    %v1144 = vadd.f32 %v1142, %v1143
    %v1145 = vrot.slane %v1144, 2
    %v1146 = vadd.f32 %v1144, %v1145
    %v1147 = vrot.slane %v1146, 1
    %v1148 = vadd.f32 %v1146, %v1147
    %v1149 = vadd.f32 %v984, %v1141
    %v1150 = vadd.f32 %v985, %v1148
    %1151 = vst [vmem:[#allocation1] ss:$9 sm:$0xff] %v1088
    %s1152 = scalar_lea.vmem [#allocation1], 1
    %1153 = vst [vmem:[%s1152] ss:$9 sm:$0xff] %v1090
    %s1154 = scalar_lea.vmem [#allocation1], 2
    %1155 = vst [vmem:[%s1154] ss:$9 sm:$0xff] %v1092
    %s1156 = scalar_lea.vmem [#allocation1], 3
    %1157 = vst [vmem:[%s1156] ss:$9 sm:$0xff] %v1094
    %s1158 = scalar_lea.vmem [#allocation1], 4
    %1159 = vst [vmem:[%s1158] ss:$9 sm:$0xff] %v1096
    %v1160 = vld [vmem:[#allocation1] sm:$0xff]
    %1161 = vst [vmem:[#allocation1] ss:$9 sm:$0xff] %v1098
    %1162 = vst [vmem:[%s1152] ss:$9 sm:$0xff] %v1100
    %1163 = vst [vmem:[%s1154] ss:$9 sm:$0xff] %v1102
    %1164 = vst [vmem:[%s1156] ss:$9 sm:$0xff] %v1104
    %1165 = vst [vmem:[%s1158] ss:$9 sm:$0xff] %v1106
    %v1166 = vld [vmem:[#allocation1] sm:$0xff]
    %1169 = vxpose.xlu0.b32.start [1/16] %v1160, 128
    %1170 = vxpose.xlu0.b32.cont [2/16] 0.0, 128
    %1171 = vxpose.xlu0.b32.cont [3/16] 0.0, 128
    %1172 = vxpose.xlu0.b32.cont [4/16] 0.0, 128
    %1173 = vxpose.xlu0.b32.cont [5/16] 0.0, 128
    %1174 = vxpose.xlu0.b32.cont [6/16] 0.0, 128
    %1175 = vxpose.xlu0.b32.cont [7/16] 0.0, 128
    %1176 = vxpose.xlu0.b32.cont [8/16] 0.0, 128
    %1177 = vxpose.xlu0.b32.cont [9/16] 0.0, 128
    %1178 = vxpose.xlu0.b32.cont [10/16] 0.0, 128
    %1179 = vxpose.xlu0.b32.cont [11/16] 0.0, 128
    %1180 = vxpose.xlu0.b32.cont [12/16] 0.0, 128
    %1181 = vxpose.xlu0.b32.cont [13/16] 0.0, 128
    %1182 = vxpose.xlu0.b32.cont [14/16] 0.0, 128
    %1183 = vxpose.xlu0.b32.cont [15/16] 0.0, 128
    %1184 = vxpose.xlu0.b32.end [16/16] 0.0, 128
    %v1185 = vpop.trf.xlu0
    %v1186 = vpop.trf.xlu0
    %v1187 = vpop.trf.xlu0
    %v1188 = vpop.trf.xlu0
    %v1189 = vpop.trf.xlu0
    %v1190 = vpop.trf.xlu0
    %v1191 = vpop.trf.xlu0
    %v1192 = vpop.trf.xlu0
    %v1193 = vpop.trf.xlu0
    %v1194 = vpop.trf.xlu0
    %v1195 = vpop.trf.xlu0
    %v1196 = vpop.trf.xlu0
    %v1197 = vpop.trf.xlu0
    %v1198 = vpop.trf.xlu0
    %v1199 = vpop.trf.xlu0
    %v1200 = vpop.trf.xlu0
    %1201 = vxpose.xlu0.b32.start [1/16] %v1166, 128
    %1202 = vxpose.xlu0.b32.cont [2/16] 0.0, 128
    %1203 = vxpose.xlu0.b32.cont [3/16] 0.0, 128
    %1204 = vxpose.xlu0.b32.cont [4/16] 0.0, 128
    %1205 = vxpose.xlu0.b32.cont [5/16] 0.0, 128
    %1206 = vxpose.xlu0.b32.cont [6/16] 0.0, 128
    %1207 = vxpose.xlu0.b32.cont [7/16] 0.0, 128
    %1208 = vxpose.xlu0.b32.cont [8/16] 0.0, 128
    %1209 = vxpose.xlu0.b32.cont [9/16] 0.0, 128
    %1210 = vxpose.xlu0.b32.cont [10/16] 0.0, 128
    %1211 = vxpose.xlu0.b32.cont [11/16] 0.0, 128
    %1212 = vxpose.xlu0.b32.cont [12/16] 0.0, 128
    %1213 = vxpose.xlu0.b32.cont [13/16] 0.0, 128
    %1214 = vxpose.xlu0.b32.cont [14/16] 0.0, 128
    %1215 = vxpose.xlu0.b32.cont [15/16] 0.0, 128
    %1216 = vxpose.xlu0.b32.end [16/16] 0.0, 128
    %v1217 = vpop.trf.xlu0
    %v1218 = vpop.trf.xlu0
    %v1219 = vpop.trf.xlu0
    %v1220 = vpop.trf.xlu0
    %v1221 = vpop.trf.xlu0
    %v1222 = vpop.trf.xlu0
    %v1223 = vpop.trf.xlu0
    %v1224 = vpop.trf.xlu0
    %v1225 = vpop.trf.xlu0
    %v1226 = vpop.trf.xlu0
    %v1227 = vpop.trf.xlu0
    %v1228 = vpop.trf.xlu0
    %v1229 = vpop.trf.xlu0
    %v1230 = vpop.trf.xlu0
    %v1231 = vpop.trf.xlu0
    %v1232 = vpop.trf.xlu0
    %v1233 = vpack.c.bf16 %v1185, %v1185
    %v1234 = vpack.c.bf16 %v1186, %v1186
    %v1235 = vpack.c.bf16 %v1217, %v1217
    %v1236 = vpack.c.bf16 %v1218, %v1218
    %v1239 = vunpack.c.l.b16 %v1233
    %v1240 = vunpack.c.l.b16 %v1234
    %v1241 = vpack.c.b16 %v1240, %v1239
    %vm1242 = vcmask 39936
    %v1244 = vsel %vm1242, %v1241, 0
    %vm1246 = vcmask 1041408
    %vm1247 = vcmask 1042432
    %v1248 = vsel %vm1246, 4294967295, 65535
    %v1249 = vsel %vm1247, %v1248, 0
    %v1250 = vand.u32 %v568, %v1249
    %1252 = vmatpush.bf16.msra.mxu0 0
    %1253 = vmatpush.bf16.msra.mxu0 0
    %1254 = vmatpush.bf16.msra.mxu0 0
    %1255 = vmatpush.bf16.msra.mxu0 0
    %1256 = vmatpush.bf16.msra.mxu0 0
    %1257 = vmatpush.bf16.msra.mxu0 0
    %1258 = vmatpush.bf16.msra.mxu0 0
    %1259 = vmatpush.bf16.msra.mxu0 %v1250
    %1260 = vmatmul.bf16.gmra.mxu0 %v1244
    %v1261 = vpop.f32.mrf.mxu0
    %v1262 = vadd.f32 0.0, %v1261
    %v1263 = vpop.f32.mrf.mxu0
    %v1264 = vadd.f32 0.0, %v1263
    %1265 = vdwg.mxu0
    %v1268 = vunpack.c.l.b16 %v1235
    %v1269 = vunpack.c.l.b16 %v1236
    %v1270 = vpack.c.b16 %v1269, %v1268
    %v1272 = vsel %vm1242, %v1270, 0
    %v1274 = vand.u32 %v569, %v1249
    %1276 = vmatpush.bf16.msra.mxu0 0
    %1277 = vmatpush.bf16.msra.mxu0 0
    %1278 = vmatpush.bf16.msra.mxu0 0
    %1279 = vmatpush.bf16.msra.mxu0 0
    %1280 = vmatpush.bf16.msra.mxu0 0
    %1281 = vmatpush.bf16.msra.mxu0 0
    %1282 = vmatpush.bf16.msra.mxu0 0
    %1283 = vmatpush.bf16.msra.mxu0 %v1274
    %1284 = vmatmul.bf16.gmra.mxu0 %v1272
    %v1285 = vpop.f32.mrf.mxu0
    %v1286 = vadd.f32 0.0, %v1285
    %v1287 = vpop.f32.mrf.mxu0
    %v1288 = vadd.f32 0.0, %v1287
    %1289 = vdwg.mxu0
    %v1292 = vunpack.c.l.b16 %v1065
    %v1293 = vunpack.c.l.b16 %v1066
    %v1294 = vpack.c.b16 %v1293, %v1292
    %vm1295 = vcmask 48128
    %v1297 = vsel %vm1295, %v1294, 0
    %v1299 = vsel %vm1247, %v208, 0
    %1301 = vmatpush.bf16.msra.mxu0 0
    %1302 = vmatpush.bf16.msra.mxu0 0
    %1303 = vmatpush.bf16.msra.mxu0 0
    %1304 = vmatpush.bf16.msra.mxu0 0
    %1305 = vmatpush.bf16.msra.mxu0 0
    %1306 = vmatpush.bf16.msra.mxu0 0
    %1307 = vmatpush.bf16.msra.mxu0 0
    %1308 = vmatpush.bf16.msra.mxu0 %v1299
    %1309 = vmatmul.bf16.gmra.mxu0 %v1297
    %v1310 = vpop.f32.mrf.mxu0
    %v1311 = vadd.f32 %v1262, %v1310
    %v1312 = vpop.f32.mrf.mxu0
    %v1313 = vadd.f32 %v1264, %v1312
    %1314 = vdwg.mxu0
    %v1317 = vunpack.c.l.b16 %v1067
    %v1318 = vunpack.c.l.b16 %v1068
    %v1319 = vpack.c.b16 %v1318, %v1317
    %v1321 = vsel %vm1295, %v1319, 0
    %v1323 = vsel %vm1247, %v209, 0
    %1325 = vmatpush.bf16.msra.mxu0 0
    %1326 = vmatpush.bf16.msra.mxu0 0
    %1327 = vmatpush.bf16.msra.mxu0 0
    %1328 = vmatpush.bf16.msra.mxu0 0
    %1329 = vmatpush.bf16.msra.mxu0 0
    %1330 = vmatpush.bf16.msra.mxu0 0
    %1331 = vmatpush.bf16.msra.mxu0 0
    %1332 = vmatpush.bf16.msra.mxu0 %v1323
    %1333 = vmatmul.bf16.gmra.mxu0 %v1321
    %v1334 = vpop.f32.mrf.mxu0
    %v1335 = vadd.f32 %v1286, %v1334
    %v1336 = vpop.f32.mrf.mxu0
    %v1337 = vadd.f32 %v1288, %v1336
    %1338 = vdwg.mxu0
    %v1339 = vsub.f32 %v902, %v919
    %v1340 = vsub.f32 %v903, %v920
    %v1341 = vmul.f32 %v1339, 1.442695
    %v1342 = vpow.pop %v1341
    %v1343 = vmul.f32 %v1340, 1.442695
    %v1344 = vpow.pop %v1343
    %v1345 = vsel %vm904, %v1342, 0.0
    %v1346 = vrot.slane %v1345, 4
    %v1347 = vadd.f32 %v1345, %v1346
    %v1348 = vrot.slane %v1347, 2
    %v1349 = vadd.f32 %v1347, %v1348
    %v1350 = vrot.slane %v1349, 1
    %v1351 = vadd.f32 %v1349, %v1350
    %v1352 = vsel %vm904, %v1344, 0.0
    %v1353 = vrot.slane %v1352, 4
    %v1354 = vadd.f32 %v1352, %v1353
    %v1355 = vrot.slane %v1354, 2
    %v1356 = vadd.f32 %v1354, %v1355
    %v1357 = vrot.slane %v1356, 1
    %v1358 = vadd.f32 %v1356, %v1357
    %v1359 = vadd.f32 %v1149, %v1351
    %v1360 = vadd.f32 %v1150, %v1358
    %1361 = vxpose.xlu0.b32.start [1/16] %v1342, 128
    %1362 = vxpose.xlu0.b32.cont [2/16] 0.0, 128
    %1363 = vxpose.xlu0.b32.cont [3/16] 0.0, 128
    %1364 = vxpose.xlu0.b32.cont [4/16] 0.0, 128
    %1365 = vxpose.xlu0.b32.cont [5/16] 0.0, 128
    %1366 = vxpose.xlu0.b32.cont [6/16] 0.0, 128
    %1367 = vxpose.xlu0.b32.cont [7/16] 0.0, 128
    %1368 = vxpose.xlu0.b32.cont [8/16] 0.0, 128
    %1369 = vxpose.xlu0.b32.cont [9/16] 0.0, 128
    %1370 = vxpose.xlu0.b32.cont [10/16] 0.0, 128
    %1371 = vxpose.xlu0.b32.cont [11/16] 0.0, 128
    %1372 = vxpose.xlu0.b32.cont [12/16] 0.0, 128
    %1373 = vxpose.xlu0.b32.cont [13/16] 0.0, 128
    %1374 = vxpose.xlu0.b32.cont [14/16] 0.0, 128
    %1375 = vxpose.xlu0.b32.cont [15/16] 0.0, 128
    %1376 = vxpose.xlu0.b32.end [16/16] 0.0, 128
    %v1377 = vpop.trf.xlu0
    %v1378 = vpop.trf.xlu0
    %v1379 = vpop.trf.xlu0
    %v1380 = vpop.trf.xlu0
    %v1381 = vpop.trf.xlu0
    %v1382 = vpop.trf.xlu0
    %v1383 = vpop.trf.xlu0
    %v1384 = vpop.trf.xlu0
    %v1385 = vpop.trf.xlu0
    %v1386 = vpop.trf.xlu0
    %v1387 = vpop.trf.xlu0
    %v1388 = vpop.trf.xlu0
    %v1389 = vpop.trf.xlu0
    %v1390 = vpop.trf.xlu0
    %v1391 = vpop.trf.xlu0
    %v1392 = vpop.trf.xlu0
    %1393 = vxpose.xlu0.b32.start [1/16] %v1344, 128
    %1394 = vxpose.xlu0.b32.cont [2/16] 0.0, 128
    %1395 = vxpose.xlu0.b32.cont [3/16] 0.0, 128
    %1396 = vxpose.xlu0.b32.cont [4/16] 0.0, 128
    %1397 = vxpose.xlu0.b32.cont [5/16] 0.0, 128
    %1398 = vxpose.xlu0.b32.cont [6/16] 0.0, 128
    %1399 = vxpose.xlu0.b32.cont [7/16] 0.0, 128
    %1400 = vxpose.xlu0.b32.cont [8/16] 0.0, 128
    %1401 = vxpose.xlu0.b32.cont [9/16] 0.0, 128
    %1402 = vxpose.xlu0.b32.cont [10/16] 0.0, 128
    %1403 = vxpose.xlu0.b32.cont [11/16] 0.0, 128
    %1404 = vxpose.xlu0.b32.cont [12/16] 0.0, 128
    %1405 = vxpose.xlu0.b32.cont [13/16] 0.0, 128
    %1406 = vxpose.xlu0.b32.cont [14/16] 0.0, 128
    %1407 = vxpose.xlu0.b32.cont [15/16] 0.0, 128
    %1408 = vxpose.xlu0.b32.end [16/16] 0.0, 128
    %v1409 = vpop.trf.xlu0
    %v1410 = vpop.trf.xlu0
    %v1411 = vpop.trf.xlu0
    %v1412 = vpop.trf.xlu0
    %v1413 = vpop.trf.xlu0
    %v1414 = vpop.trf.xlu0
    %v1415 = vpop.trf.xlu0
    %v1416 = vpop.trf.xlu0
    %v1417 = vpop.trf.xlu0
    %v1418 = vpop.trf.xlu0
    %v1419 = vpop.trf.xlu0
    %v1420 = vpop.trf.xlu0
    %v1421 = vpop.trf.xlu0
    %v1422 = vpop.trf.xlu0
    %v1423 = vpop.trf.xlu0
    %v1424 = vpop.trf.xlu0
    %v1425 = vpack.c.bf16 %v1377, %v1377
    %v1426 = vpack.c.bf16 %v1378, %v1378
    %v1427 = vpack.c.bf16 %v1409, %v1409
    %v1428 = vpack.c.bf16 %v1410, %v1410
    %v1431 = vunpack.c.l.b16 %v1425
    %v1432 = vunpack.c.l.b16 %v1426
    %v1433 = vpack.c.b16 %v1432, %v1431
    %vm1434 = vcmask 31744
    %v1436 = vsel %vm1434, %v1433, 0
    %v1438 = vsel %vm1246, %v846, 0
    %1440 = vmatpush.bf16.msra.mxu0 0
    %1441 = vmatpush.bf16.msra.mxu0 0
    %1442 = vmatpush.bf16.msra.mxu0 0
    %1443 = vmatpush.bf16.msra.mxu0 0
    %1444 = vmatpush.bf16.msra.mxu0 0
    %1445 = vmatpush.bf16.msra.mxu0 0
    %1446 = vmatpush.bf16.msra.mxu0 0
    %1447 = vmatpush.bf16.msra.mxu0 %v1438
    %1448 = vmatmul.bf16.gmra.mxu0 %v1436
    %v1449 = vpop.f32.mrf.mxu0
    %v1450 = vadd.f32 0.0, %v1449
    %v1451 = vpop.f32.mrf.mxu0
    %v1452 = vadd.f32 0.0, %v1451
    %1453 = vdwg.mxu0
    %v1456 = vunpack.c.l.b16 %v1427
    %v1457 = vunpack.c.l.b16 %v1428
    %v1458 = vpack.c.b16 %v1457, %v1456
    %v1460 = vsel %vm1434, %v1458, 0
    %v1462 = vsel %vm1246, %v847, 0
    %1464 = vmatpush.bf16.msra.mxu0 0
    %1465 = vmatpush.bf16.msra.mxu0 0
    %1466 = vmatpush.bf16.msra.mxu0 0
    %1467 = vmatpush.bf16.msra.mxu0 0
    %1468 = vmatpush.bf16.msra.mxu0 0
    %1469 = vmatpush.bf16.msra.mxu0 0
    %1470 = vmatpush.bf16.msra.mxu0 0
    %1471 = vmatpush.bf16.msra.mxu0 %v1462
    %1472 = vmatmul.bf16.gmra.mxu0 %v1460
    %v1473 = vpop.f32.mrf.mxu0
    %v1474 = vadd.f32 0.0, %v1473
    %v1475 = vpop.f32.mrf.mxu0
    %v1476 = vadd.f32 0.0, %v1475
    %1477 = vdwg.mxu0
    %v1478 = vadd.f32 %v1311, %v1450
    %v1479 = vadd.f32 %v1313, %v1452
    %v1480 = vadd.f32 %v1335, %v1474
    %v1481 = vadd.f32 %v1337, %v1476
    %v1482 = vrcp.pop %v1359
    %v1483 = vrcp.pop %v1360
    %v1484 = vlaneseq
    %v1485 = vshrl.u32 %v1484, 7
    %1487 = vset.pattern.permute.xlu0 %v1485
    %1488 = vperm.xlu0 %1487, %v1482
    %v1489 = vpop.permute.xlu0 %1488
    %v1490 = vlaneseq
    %v1491 = vshrl.u32 %v1490, 7
    %v1492 = vadd.s32 %v1491, 8
    %1493 = vset.pattern.permute.xlu0 %v1492
    %1494 = vperm.xlu0 %1493, %v1482
    %v1495 = vpop.permute.xlu0 %1494
    %v1496 = vlaneseq
    %v1497 = vshrl.u32 %v1496, 7
    %1499 = vset.pattern.permute.xlu0 %v1497
    %1500 = vperm.xlu0 %1499, %v1483
    %v1501 = vpop.permute.xlu0 %1500
    %v1502 = vlaneseq
    %v1503 = vshrl.u32 %v1502, 7
    %v1504 = vadd.s32 %v1503, 8
    %1505 = vset.pattern.permute.xlu0 %v1504
    %1506 = vperm.xlu0 %1505, %v1483
    %v1507 = vpop.permute.xlu0 %1506
    %v1508 = vmul.f32 %v1478, %v1489
    %v1509 = vmul.f32 %v1479, %v1495
    %v1510 = vmul.f32 %v1480, %v1501
    %v1511 = vmul.f32 %v1481, %v1507
    %v1512 = vperm.slane %v1508, 0
    %v1513 = vlaneseq
    %v1514 = vshrl.u32 %v1513, 7
    %1516 = vset.pattern.permute.xlu0 %v1514
    %1517 = vperm.xlu0 %1516, %v1512
    %v1518 = vpop.permute.xlu0 %1517
    %v1519 = vlaneseq
    %v1520 = vshrl.u32 %v1519, 7
    %v1521 = vadd.s32 %v1520, 8
    %1522 = vset.pattern.permute.xlu0 %v1521
    %1523 = vperm.xlu0 %1522, %v1512
    %v1524 = vpop.permute.xlu0 %1523
    %v1525 = vlaneseq
    %v1526 = vshrl.u32 %v1525, 7
    %v1527 = vadd.s32 %v1526, 16
    %1528 = vset.pattern.permute.xlu0 %v1527
    %1529 = vperm.xlu0 %1528, %v1512
    %v1530 = vpop.permute.xlu0 %1529
    %v1531 = vlaneseq
    %v1532 = vshrl.u32 %v1531, 7
    %v1533 = vadd.s32 %v1532, 24
    %1534 = vset.pattern.permute.xlu0 %v1533
    %1535 = vperm.xlu0 %1534, %v1512
    %v1536 = vpop.permute.xlu0 %1535
    %v1537 = vperm.slane %v1508, 1
    %v1538 = vlaneseq
    %v1539 = vshrl.u32 %v1538, 7
    %1541 = vset.pattern.permute.xlu0 %v1539
    %1542 = vperm.xlu0 %1541, %v1537
    %v1543 = vpop.permute.xlu0 %1542
    %v1544 = vlaneseq
    %v1545 = vshrl.u32 %v1544, 7
    %v1546 = vadd.s32 %v1545, 8
    %1547 = vset.pattern.permute.xlu0 %v1546
    %1548 = vperm.xlu0 %1547, %v1537
    %v1549 = vpop.permute.xlu0 %1548
    %v1550 = vlaneseq
    %v1551 = vshrl.u32 %v1550, 7
    %v1552 = vadd.s32 %v1551, 16
    %1553 = vset.pattern.permute.xlu0 %v1552
    %1554 = vperm.xlu0 %1553, %v1537
    %v1555 = vpop.permute.xlu0 %1554
    %v1556 = vlaneseq
    %v1557 = vshrl.u32 %v1556, 7
    %v1558 = vadd.s32 %v1557, 24
    %1559 = vset.pattern.permute.xlu0 %v1558
    %1560 = vperm.xlu0 %1559, %v1537
    %v1561 = vpop.permute.xlu0 %1560
    %v1562 = vperm.slane %v1508, 2
    %v1563 = vlaneseq
    %v1564 = vshrl.u32 %v1563, 7
    %1566 = vset.pattern.permute.xlu0 %v1564
    %1567 = vperm.xlu0 %1566, %v1562
    %v1568 = vpop.permute.xlu0 %1567
    %v1569 = vlaneseq
    %v1570 = vshrl.u32 %v1569, 7
    %v1571 = vadd.s32 %v1570, 8
    %1572 = vset.pattern.permute.xlu0 %v1571
    %1573 = vperm.xlu0 %1572, %v1562
    %v1574 = vpop.permute.xlu0 %1573
    %v1575 = vlaneseq
    %v1576 = vshrl.u32 %v1575, 7
    %v1577 = vadd.s32 %v1576, 16
    %1578 = vset.pattern.permute.xlu0 %v1577
    %1579 = vperm.xlu0 %1578, %v1562
    %v1580 = vpop.permute.xlu0 %1579
    %v1581 = vlaneseq
    %v1582 = vshrl.u32 %v1581, 7
    %v1583 = vadd.s32 %v1582, 24
    %1584 = vset.pattern.permute.xlu0 %v1583
    %1585 = vperm.xlu0 %1584, %v1562
    %v1586 = vpop.permute.xlu0 %1585
    %v1587 = vperm.slane %v1508, 3
    %v1588 = vlaneseq
    %v1589 = vshrl.u32 %v1588, 7
    %1591 = vset.pattern.permute.xlu0 %v1589
    %1592 = vperm.xlu0 %1591, %v1587
    %v1593 = vpop.permute.xlu0 %1592
    %v1594 = vlaneseq
    %v1595 = vshrl.u32 %v1594, 7
    %v1596 = vadd.s32 %v1595, 8
    %1597 = vset.pattern.permute.xlu0 %v1596
    %1598 = vperm.xlu0 %1597, %v1587
    %v1599 = vpop.permute.xlu0 %1598
    %v1600 = vlaneseq
    %v1601 = vshrl.u32 %v1600, 7
    %v1602 = vadd.s32 %v1601, 16
    %1603 = vset.pattern.permute.xlu0 %v1602
    %1604 = vperm.xlu0 %1603, %v1587
    %v1605 = vpop.permute.xlu0 %1604
    %v1606 = vlaneseq
    %v1607 = vshrl.u32 %v1606, 7
    %v1608 = vadd.s32 %v1607, 24
    %1609 = vset.pattern.permute.xlu0 %v1608
    %1610 = vperm.xlu0 %1609, %v1587
    %v1611 = vpop.permute.xlu0 %1610
    %v1612 = vperm.slane %v1508, 4
    %v1613 = vlaneseq
    %v1614 = vshrl.u32 %v1613, 7
    %1616 = vset.pattern.permute.xlu0 %v1614
    %1617 = vperm.xlu0 %1616, %v1612
    %v1618 = vpop.permute.xlu0 %1617
    %v1619 = vlaneseq
    %v1620 = vshrl.u32 %v1619, 7
    %v1621 = vadd.s32 %v1620, 8
    %1622 = vset.pattern.permute.xlu0 %v1621
    %1623 = vperm.xlu0 %1622, %v1612
    %v1624 = vpop.permute.xlu0 %1623
    %v1625 = vlaneseq
    %v1626 = vshrl.u32 %v1625, 7
    %v1627 = vadd.s32 %v1626, 16
    %1628 = vset.pattern.permute.xlu0 %v1627
    %1629 = vperm.xlu0 %1628, %v1612
    %v1630 = vpop.permute.xlu0 %1629
    %v1631 = vlaneseq
    %v1632 = vshrl.u32 %v1631, 7
    %v1633 = vadd.s32 %v1632, 24
    %1634 = vset.pattern.permute.xlu0 %v1633
    %1635 = vperm.xlu0 %1634, %v1612
    %v1636 = vpop.permute.xlu0 %1635
    %v1637 = vperm.slane %v1508, 5
    %v1638 = vlaneseq
    %v1639 = vshrl.u32 %v1638, 7
    %1641 = vset.pattern.permute.xlu0 %v1639
    %1642 = vperm.xlu0 %1641, %v1637
    %v1643 = vpop.permute.xlu0 %1642
    %v1644 = vlaneseq
    %v1645 = vshrl.u32 %v1644, 7
    %v1646 = vadd.s32 %v1645, 8
    %1647 = vset.pattern.permute.xlu0 %v1646
    %1648 = vperm.xlu0 %1647, %v1637
    %v1649 = vpop.permute.xlu0 %1648
    %v1650 = vlaneseq
    %v1651 = vshrl.u32 %v1650, 7
    %v1652 = vadd.s32 %v1651, 16
    %1653 = vset.pattern.permute.xlu0 %v1652
    %1654 = vperm.xlu0 %1653, %v1637
    %v1655 = vpop.permute.xlu0 %1654
    %v1656 = vlaneseq
    %v1657 = vshrl.u32 %v1656, 7
    %v1658 = vadd.s32 %v1657, 24
    %1659 = vset.pattern.permute.xlu0 %v1658
    %1660 = vperm.xlu0 %1659, %v1637
    %v1661 = vpop.permute.xlu0 %1660
    %v1662 = vperm.slane %v1508, 6
    %v1663 = vlaneseq
    %v1664 = vshrl.u32 %v1663, 7
    %1666 = vset.pattern.permute.xlu0 %v1664
    %1667 = vperm.xlu0 %1666, %v1662
    %v1668 = vpop.permute.xlu0 %1667
    %v1669 = vlaneseq
    %v1670 = vshrl.u32 %v1669, 7
    %v1671 = vadd.s32 %v1670, 8
    %1672 = vset.pattern.permute.xlu0 %v1671
    %1673 = vperm.xlu0 %1672, %v1662
    %v1674 = vpop.permute.xlu0 %1673
    %v1675 = vlaneseq
    %v1676 = vshrl.u32 %v1675, 7
    %v1677 = vadd.s32 %v1676, 16
    %1678 = vset.pattern.permute.xlu0 %v1677
    %1679 = vperm.xlu0 %1678, %v1662
    %v1680 = vpop.permute.xlu0 %1679
    %v1681 = vlaneseq
    %v1682 = vshrl.u32 %v1681, 7
    %v1683 = vadd.s32 %v1682, 24
    %1684 = vset.pattern.permute.xlu0 %v1683
    %1685 = vperm.xlu0 %1684, %v1662
    %v1686 = vpop.permute.xlu0 %1685
    %v1687 = vperm.slane %v1508, 7
    %v1688 = vlaneseq
    %v1689 = vshrl.u32 %v1688, 7
    %1691 = vset.pattern.permute.xlu0 %v1689
    %1692 = vperm.xlu0 %1691, %v1687
    %v1693 = vpop.permute.xlu0 %1692
    %v1694 = vlaneseq
    %v1695 = vshrl.u32 %v1694, 7
    %v1696 = vadd.s32 %v1695, 8
    %1697 = vset.pattern.permute.xlu0 %v1696
    %1698 = vperm.xlu0 %1697, %v1687
    %v1699 = vpop.permute.xlu0 %1698
    %v1700 = vlaneseq
    %v1701 = vshrl.u32 %v1700, 7
    %v1702 = vadd.s32 %v1701, 16
    %1703 = vset.pattern.permute.xlu0 %v1702
    %1704 = vperm.xlu0 %1703, %v1687
    %v1705 = vpop.permute.xlu0 %1704
    %v1706 = vlaneseq
    %v1707 = vshrl.u32 %v1706, 7
    %v1708 = vadd.s32 %v1707, 24
    %1709 = vset.pattern.permute.xlu0 %v1708
    %1710 = vperm.xlu0 %1709, %v1687
    %v1711 = vpop.permute.xlu0 %1710
    %v1712 = vperm.slane %v1509, 0
    %v1713 = vlaneseq
    %v1714 = vshrl.u32 %v1713, 7
    %1716 = vset.pattern.permute.xlu0 %v1714
    %1717 = vperm.xlu0 %1716, %v1712
    %v1718 = vpop.permute.xlu0 %1717
    %v1719 = vlaneseq
    %v1720 = vshrl.u32 %v1719, 7
    %v1721 = vadd.s32 %v1720, 8
    %1722 = vset.pattern.permute.xlu0 %v1721
    %1723 = vperm.xlu0 %1722, %v1712
    %v1724 = vpop.permute.xlu0 %1723
    %v1725 = vlaneseq
    %v1726 = vshrl.u32 %v1725, 7
    %v1727 = vadd.s32 %v1726, 16
    %1728 = vset.pattern.permute.xlu0 %v1727
    %1729 = vperm.xlu0 %1728, %v1712
    %v1730 = vpop.permute.xlu0 %1729
    %v1731 = vlaneseq
    %v1732 = vshrl.u32 %v1731, 7
    %v1733 = vadd.s32 %v1732, 24
    %1734 = vset.pattern.permute.xlu0 %v1733
    %1735 = vperm.xlu0 %1734, %v1712
    %v1736 = vpop.permute.xlu0 %1735
    %v1737 = vperm.slane %v1509, 1
    %v1738 = vlaneseq
    %v1739 = vshrl.u32 %v1738, 7
    %1741 = vset.pattern.permute.xlu0 %v1739
    %1742 = vperm.xlu0 %1741, %v1737
    %v1743 = vpop.permute.xlu0 %1742
    %v1744 = vlaneseq
    %v1745 = vshrl.u32 %v1744, 7
    %v1746 = vadd.s32 %v1745, 8
    %1747 = vset.pattern.permute.xlu0 %v1746
    %1748 = vperm.xlu0 %1747, %v1737
    %v1749 = vpop.permute.xlu0 %1748
    %v1750 = vlaneseq
    %v1751 = vshrl.u32 %v1750, 7
    %v1752 = vadd.s32 %v1751, 16
    %1753 = vset.pattern.permute.xlu0 %v1752
    %1754 = vperm.xlu0 %1753, %v1737
    %v1755 = vpop.permute.xlu0 %1754
    %v1756 = vlaneseq
    %v1757 = vshrl.u32 %v1756, 7
    %v1758 = vadd.s32 %v1757, 24
    %1759 = vset.pattern.permute.xlu0 %v1758
    %1760 = vperm.xlu0 %1759, %v1737
    %v1761 = vpop.permute.xlu0 %1760
    %v1762 = vperm.slane %v1509, 2
    %v1763 = vlaneseq
    %v1764 = vshrl.u32 %v1763, 7
    %1766 = vset.pattern.permute.xlu0 %v1764
    %1767 = vperm.xlu0 %1766, %v1762
    %v1768 = vpop.permute.xlu0 %1767
    %v1769 = vlaneseq
    %v1770 = vshrl.u32 %v1769, 7
    %v1771 = vadd.s32 %v1770, 8
    %1772 = vset.pattern.permute.xlu0 %v1771
    %1773 = vperm.xlu0 %1772, %v1762
    %v1774 = vpop.permute.xlu0 %1773
    %v1775 = vlaneseq
    %v1776 = vshrl.u32 %v1775, 7
    %v1777 = vadd.s32 %v1776, 16
    %1778 = vset.pattern.permute.xlu0 %v1777
    %1779 = vperm.xlu0 %1778, %v1762
    %v1780 = vpop.permute.xlu0 %1779
    %v1781 = vlaneseq
    %v1782 = vshrl.u32 %v1781, 7
    %v1783 = vadd.s32 %v1782, 24
    %1784 = vset.pattern.permute.xlu0 %v1783
    %1785 = vperm.xlu0 %1784, %v1762
    %v1786 = vpop.permute.xlu0 %1785
    %v1787 = vperm.slane %v1509, 3
    %v1788 = vlaneseq
    %v1789 = vshrl.u32 %v1788, 7
    %1791 = vset.pattern.permute.xlu0 %v1789
    %1792 = vperm.xlu0 %1791, %v1787
    %v1793 = vpop.permute.xlu0 %1792
    %v1794 = vlaneseq
    %v1795 = vshrl.u32 %v1794, 7
    %v1796 = vadd.s32 %v1795, 8
    %1797 = vset.pattern.permute.xlu0 %v1796
    %1798 = vperm.xlu0 %1797, %v1787
    %v1799 = vpop.permute.xlu0 %1798
    %v1800 = vlaneseq
    %v1801 = vshrl.u32 %v1800, 7
    %v1802 = vadd.s32 %v1801, 16
    %1803 = vset.pattern.permute.xlu0 %v1802
    %1804 = vperm.xlu0 %1803, %v1787
    %v1805 = vpop.permute.xlu0 %1804
    %v1806 = vlaneseq
    %v1807 = vshrl.u32 %v1806, 7
    %v1808 = vadd.s32 %v1807, 24
    %1809 = vset.pattern.permute.xlu0 %v1808
    %1810 = vperm.xlu0 %1809, %v1787
    %v1811 = vpop.permute.xlu0 %1810
    %v1812 = vperm.slane %v1509, 4
    %v1813 = vlaneseq
    %v1814 = vshrl.u32 %v1813, 7
    %1816 = vset.pattern.permute.xlu0 %v1814
    %1817 = vperm.xlu0 %1816, %v1812
    %v1818 = vpop.permute.xlu0 %1817
    %v1819 = vlaneseq
    %v1820 = vshrl.u32 %v1819, 7
    %v1821 = vadd.s32 %v1820, 8
    %1822 = vset.pattern.permute.xlu0 %v1821
    %1823 = vperm.xlu0 %1822, %v1812
    %v1824 = vpop.permute.xlu0 %1823
    %v1825 = vlaneseq
    %v1826 = vshrl.u32 %v1825, 7
    %v1827 = vadd.s32 %v1826, 16
    %1828 = vset.pattern.permute.xlu0 %v1827
    %1829 = vperm.xlu0 %1828, %v1812
    %v1830 = vpop.permute.xlu0 %1829
    %v1831 = vlaneseq
    %v1832 = vshrl.u32 %v1831, 7
    %v1833 = vadd.s32 %v1832, 24
    %1834 = vset.pattern.permute.xlu0 %v1833
    %1835 = vperm.xlu0 %1834, %v1812
    %v1836 = vpop.permute.xlu0 %1835
    %v1837 = vperm.slane %v1509, 5
    %v1838 = vlaneseq
    %v1839 = vshrl.u32 %v1838, 7
    %1841 = vset.pattern.permute.xlu0 %v1839
    %1842 = vperm.xlu0 %1841, %v1837
    %v1843 = vpop.permute.xlu0 %1842
    %v1844 = vlaneseq
    %v1845 = vshrl.u32 %v1844, 7
    %v1846 = vadd.s32 %v1845, 8
    %1847 = vset.pattern.permute.xlu0 %v1846
    %1848 = vperm.xlu0 %1847, %v1837
    %v1849 = vpop.permute.xlu0 %1848
    %v1850 = vlaneseq
    %v1851 = vshrl.u32 %v1850, 7
    %v1852 = vadd.s32 %v1851, 16
    %1853 = vset.pattern.permute.xlu0 %v1852
    %1854 = vperm.xlu0 %1853, %v1837
    %v1855 = vpop.permute.xlu0 %1854
    %v1856 = vlaneseq
    %v1857 = vshrl.u32 %v1856, 7
    %v1858 = vadd.s32 %v1857, 24
    %1859 = vset.pattern.permute.xlu0 %v1858
    %1860 = vperm.xlu0 %1859, %v1837
    %v1861 = vpop.permute.xlu0 %1860
    %v1862 = vperm.slane %v1510, 0
    %v1863 = vlaneseq
    %v1864 = vshrl.u32 %v1863, 7
    %1866 = vset.pattern.permute.xlu0 %v1864
    %1867 = vperm.xlu0 %1866, %v1862
    %v1868 = vpop.permute.xlu0 %1867
    %v1869 = vlaneseq
    %v1870 = vshrl.u32 %v1869, 7
    %v1871 = vadd.s32 %v1870, 8
    %1872 = vset.pattern.permute.xlu0 %v1871
    %1873 = vperm.xlu0 %1872, %v1862
    %v1874 = vpop.permute.xlu0 %1873
    %v1875 = vlaneseq
    %v1876 = vshrl.u32 %v1875, 7
    %v1877 = vadd.s32 %v1876, 16
    %1878 = vset.pattern.permute.xlu0 %v1877
    %1879 = vperm.xlu0 %1878, %v1862
    %v1880 = vpop.permute.xlu0 %1879
    %v1881 = vlaneseq
    %v1882 = vshrl.u32 %v1881, 7
    %v1883 = vadd.s32 %v1882, 24
    %1884 = vset.pattern.permute.xlu0 %v1883
    %1885 = vperm.xlu0 %1884, %v1862
    %v1886 = vpop.permute.xlu0 %1885
    %v1887 = vperm.slane %v1510, 1
    %v1888 = vlaneseq
    %v1889 = vshrl.u32 %v1888, 7
    %1891 = vset.pattern.permute.xlu0 %v1889
    %1892 = vperm.xlu0 %1891, %v1887
    %v1893 = vpop.permute.xlu0 %1892
    %v1894 = vlaneseq
    %v1895 = vshrl.u32 %v1894, 7
    %v1896 = vadd.s32 %v1895, 8
    %1897 = vset.pattern.permute.xlu0 %v1896
    %1898 = vperm.xlu0 %1897, %v1887
    %v1899 = vpop.permute.xlu0 %1898
    %v1900 = vlaneseq
    %v1901 = vshrl.u32 %v1900, 7
    %v1902 = vadd.s32 %v1901, 16
    %1903 = vset.pattern.permute.xlu0 %v1902
    %1904 = vperm.xlu0 %1903, %v1887
    %v1905 = vpop.permute.xlu0 %1904
    %v1906 = vlaneseq
    %v1907 = vshrl.u32 %v1906, 7
    %v1908 = vadd.s32 %v1907, 24
    %1909 = vset.pattern.permute.xlu0 %v1908
    %1910 = vperm.xlu0 %1909, %v1887
    %v1911 = vpop.permute.xlu0 %1910
    %v1912 = vperm.slane %v1510, 2
    %v1913 = vlaneseq
    %v1914 = vshrl.u32 %v1913, 7
    %1916 = vset.pattern.permute.xlu0 %v1914
    %1917 = vperm.xlu0 %1916, %v1912
    %v1918 = vpop.permute.xlu0 %1917
    %v1919 = vlaneseq
    %v1920 = vshrl.u32 %v1919, 7
    %v1921 = vadd.s32 %v1920, 8
    %1922 = vset.pattern.permute.xlu0 %v1921
    %1923 = vperm.xlu0 %1922, %v1912
    %v1924 = vpop.permute.xlu0 %1923
    %v1925 = vlaneseq
    %v1926 = vshrl.u32 %v1925, 7
    %v1927 = vadd.s32 %v1926, 16
    %1928 = vset.pattern.permute.xlu0 %v1927
    %1929 = vperm.xlu0 %1928, %v1912
    %v1930 = vpop.permute.xlu0 %1929
    %v1931 = vlaneseq
    %v1932 = vshrl.u32 %v1931, 7
    %v1933 = vadd.s32 %v1932, 24
    %1934 = vset.pattern.permute.xlu0 %v1933
    %1935 = vperm.xlu0 %1934, %v1912
    %v1936 = vpop.permute.xlu0 %1935
    %v1937 = vperm.slane %v1510, 3
    %v1938 = vlaneseq
    %v1939 = vshrl.u32 %v1938, 7
    %1941 = vset.pattern.permute.xlu0 %v1939
    %1942 = vperm.xlu0 %1941, %v1937
    %v1943 = vpop.permute.xlu0 %1942
    %v1944 = vlaneseq
    %v1945 = vshrl.u32 %v1944, 7
    %v1946 = vadd.s32 %v1945, 8
    %1947 = vset.pattern.permute.xlu0 %v1946
    %1948 = vperm.xlu0 %1947, %v1937
    %v1949 = vpop.permute.xlu0 %1948
    %v1950 = vlaneseq
    %v1951 = vshrl.u32 %v1950, 7
    %v1952 = vadd.s32 %v1951, 16
    %1953 = vset.pattern.permute.xlu0 %v1952
    %1954 = vperm.xlu0 %1953, %v1937
    %v1955 = vpop.permute.xlu0 %1954
    %v1956 = vlaneseq
    %v1957 = vshrl.u32 %v1956, 7
    %v1958 = vadd.s32 %v1957, 24
    %1959 = vset.pattern.permute.xlu0 %v1958
    %1960 = vperm.xlu0 %1959, %v1937
    %v1961 = vpop.permute.xlu0 %1960
    %v1962 = vperm.slane %v1510, 4
    %v1963 = vlaneseq
    %v1964 = vshrl.u32 %v1963, 7
    %1966 = vset.pattern.permute.xlu0 %v1964
    %1967 = vperm.xlu0 %1966, %v1962
    %v1968 = vpop.permute.xlu0 %1967
    %v1969 = vlaneseq
    %v1970 = vshrl.u32 %v1969, 7
    %v1971 = vadd.s32 %v1970, 8
    %1972 = vset.pattern.permute.xlu0 %v1971
    %1973 = vperm.xlu0 %1972, %v1962
    %v1974 = vpop.permute.xlu0 %1973
    %v1975 = vlaneseq
    %v1976 = vshrl.u32 %v1975, 7
    %v1977 = vadd.s32 %v1976, 16
    %1978 = vset.pattern.permute.xlu0 %v1977
    %1979 = vperm.xlu0 %1978, %v1962
    %v1980 = vpop.permute.xlu0 %1979
    %v1981 = vlaneseq
    %v1982 = vshrl.u32 %v1981, 7
    %v1983 = vadd.s32 %v1982, 24
    %1984 = vset.pattern.permute.xlu0 %v1983
    %1985 = vperm.xlu0 %1984, %v1962
    %v1986 = vpop.permute.xlu0 %1985
    %v1987 = vperm.slane %v1510, 5
    %v1988 = vlaneseq
    %v1989 = vshrl.u32 %v1988, 7
    %1991 = vset.pattern.permute.xlu0 %v1989
    %1992 = vperm.xlu0 %1991, %v1987
    %v1993 = vpop.permute.xlu0 %1992
    %v1994 = vlaneseq
    %v1995 = vshrl.u32 %v1994, 7
    %v1996 = vadd.s32 %v1995, 8
    %1997 = vset.pattern.permute.xlu0 %v1996
    %1998 = vperm.xlu0 %1997, %v1987
    %v1999 = vpop.permute.xlu0 %1998
    %v2000 = vlaneseq
    %v2001 = vshrl.u32 %v2000, 7
    %v2002 = vadd.s32 %v2001, 16
    %2003 = vset.pattern.permute.xlu0 %v2002
    %2004 = vperm.xlu0 %2003, %v1987
    %v2005 = vpop.permute.xlu0 %2004
    %v2006 = vlaneseq
    %v2007 = vshrl.u32 %v2006, 7
    %v2008 = vadd.s32 %v2007, 24
    %2009 = vset.pattern.permute.xlu0 %v2008
    %2010 = vperm.xlu0 %2009, %v1987
    %v2011 = vpop.permute.xlu0 %2010
    %v2012 = vperm.slane %v1510, 6
    %v2013 = vlaneseq
    %v2014 = vshrl.u32 %v2013, 7
    %2016 = vset.pattern.permute.xlu0 %v2014
    %2017 = vperm.xlu0 %2016, %v2012
    %v2018 = vpop.permute.xlu0 %2017
    %v2019 = vlaneseq
    %v2020 = vshrl.u32 %v2019, 7
    %v2021 = vadd.s32 %v2020, 8
    %2022 = vset.pattern.permute.xlu0 %v2021
    %2023 = vperm.xlu0 %2022, %v2012
    %v2024 = vpop.permute.xlu0 %2023
    %v2025 = vlaneseq
    %v2026 = vshrl.u32 %v2025, 7
    %v2027 = vadd.s32 %v2026, 16
    %2028 = vset.pattern.permute.xlu0 %v2027
    %2029 = vperm.xlu0 %2028, %v2012
    %v2030 = vpop.permute.xlu0 %2029
    %v2031 = vlaneseq
    %v2032 = vshrl.u32 %v2031, 7
    %v2033 = vadd.s32 %v2032, 24
    %2034 = vset.pattern.permute.xlu0 %v2033
    %2035 = vperm.xlu0 %2034, %v2012
    %v2036 = vpop.permute.xlu0 %2035
    %v2037 = vperm.slane %v1510, 7
    %v2038 = vlaneseq
    %v2039 = vshrl.u32 %v2038, 7
    %2041 = vset.pattern.permute.xlu0 %v2039
    %2042 = vperm.xlu0 %2041, %v2037
    %v2043 = vpop.permute.xlu0 %2042
    %v2044 = vlaneseq
    %v2045 = vshrl.u32 %v2044, 7
    %v2046 = vadd.s32 %v2045, 8
    %2047 = vset.pattern.permute.xlu0 %v2046
    %2048 = vperm.xlu0 %2047, %v2037
    %v2049 = vpop.permute.xlu0 %2048
    %v2050 = vlaneseq
    %v2051 = vshrl.u32 %v2050, 7
    %v2052 = vadd.s32 %v2051, 16
    %2053 = vset.pattern.permute.xlu0 %v2052
    %2054 = vperm.xlu0 %2053, %v2037
    %v2055 = vpop.permute.xlu0 %2054
    %v2056 = vlaneseq
    %v2057 = vshrl.u32 %v2056, 7
    %v2058 = vadd.s32 %v2057, 24
    %2059 = vset.pattern.permute.xlu0 %v2058
    %2060 = vperm.xlu0 %2059, %v2037
    %v2061 = vpop.permute.xlu0 %2060
    %v2062 = vperm.slane %v1511, 0
    %v2063 = vlaneseq
    %v2064 = vshrl.u32 %v2063, 7
    %2066 = vset.pattern.permute.xlu0 %v2064
    %2067 = vperm.xlu0 %2066, %v2062
    %v2068 = vpop.permute.xlu0 %2067
    %v2069 = vlaneseq
    %v2070 = vshrl.u32 %v2069, 7
    %v2071 = vadd.s32 %v2070, 8
    %2072 = vset.pattern.permute.xlu0 %v2071
    %2073 = vperm.xlu0 %2072, %v2062
    %v2074 = vpop.permute.xlu0 %2073
    %v2075 = vlaneseq
    %v2076 = vshrl.u32 %v2075, 7
    %v2077 = vadd.s32 %v2076, 16
    %2078 = vset.pattern.permute.xlu0 %v2077
    %2079 = vperm.xlu0 %2078, %v2062
    %v2080 = vpop.permute.xlu0 %2079
    %v2081 = vlaneseq
    %v2082 = vshrl.u32 %v2081, 7
    %v2083 = vadd.s32 %v2082, 24
    %2084 = vset.pattern.permute.xlu0 %v2083
    %2085 = vperm.xlu0 %2084, %v2062
    %v2086 = vpop.permute.xlu0 %2085
    %v2087 = vperm.slane %v1511, 1
    %v2088 = vlaneseq
    %v2089 = vshrl.u32 %v2088, 7
    %2091 = vset.pattern.permute.xlu0 %v2089
    %2092 = vperm.xlu0 %2091, %v2087
    %v2093 = vpop.permute.xlu0 %2092
    %v2094 = vlaneseq
    %v2095 = vshrl.u32 %v2094, 7
    %v2096 = vadd.s32 %v2095, 8
    %2097 = vset.pattern.permute.xlu0 %v2096
    %2098 = vperm.xlu0 %2097, %v2087
    %v2099 = vpop.permute.xlu0 %2098
    %v2100 = vlaneseq
    %v2101 = vshrl.u32 %v2100, 7
    %v2102 = vadd.s32 %v2101, 16
    %2103 = vset.pattern.permute.xlu0 %v2102
    %2104 = vperm.xlu0 %2103, %v2087
    %v2105 = vpop.permute.xlu0 %2104
    %v2106 = vlaneseq
    %v2107 = vshrl.u32 %v2106, 7
    %v2108 = vadd.s32 %v2107, 24
    %2109 = vset.pattern.permute.xlu0 %v2108
    %2110 = vperm.xlu0 %2109, %v2087
    %v2111 = vpop.permute.xlu0 %2110
    %v2112 = vperm.slane %v1511, 2
    %v2113 = vlaneseq
    %v2114 = vshrl.u32 %v2113, 7
    %2116 = vset.pattern.permute.xlu0 %v2114
    %2117 = vperm.xlu0 %2116, %v2112
    %v2118 = vpop.permute.xlu0 %2117
    %v2119 = vlaneseq
    %v2120 = vshrl.u32 %v2119, 7
    %v2121 = vadd.s32 %v2120, 8
    %2122 = vset.pattern.permute.xlu0 %v2121
    %2123 = vperm.xlu0 %2122, %v2112
    %v2124 = vpop.permute.xlu0 %2123
    %v2125 = vlaneseq
    %v2126 = vshrl.u32 %v2125, 7
    %v2127 = vadd.s32 %v2126, 16
    %2128 = vset.pattern.permute.xlu0 %v2127
    %2129 = vperm.xlu0 %2128, %v2112
    %v2130 = vpop.permute.xlu0 %2129
    %v2131 = vlaneseq
    %v2132 = vshrl.u32 %v2131, 7
    %v2133 = vadd.s32 %v2132, 24
    %2134 = vset.pattern.permute.xlu0 %v2133
    %2135 = vperm.xlu0 %2134, %v2112
    %v2136 = vpop.permute.xlu0 %2135
    %v2137 = vperm.slane %v1511, 3
    %v2138 = vlaneseq
    %v2139 = vshrl.u32 %v2138, 7
    %2141 = vset.pattern.permute.xlu0 %v2139
    %2142 = vperm.xlu0 %2141, %v2137
    %v2143 = vpop.permute.xlu0 %2142
    %v2144 = vlaneseq
    %v2145 = vshrl.u32 %v2144, 7
    %v2146 = vadd.s32 %v2145, 8
    %2147 = vset.pattern.permute.xlu0 %v2146
    %2148 = vperm.xlu0 %2147, %v2137
    %v2149 = vpop.permute.xlu0 %2148
    %v2150 = vlaneseq
    %v2151 = vshrl.u32 %v2150, 7
    %v2152 = vadd.s32 %v2151, 16
    %2153 = vset.pattern.permute.xlu0 %v2152
    %2154 = vperm.xlu0 %2153, %v2137
    %v2155 = vpop.permute.xlu0 %2154
    %v2156 = vlaneseq
    %v2157 = vshrl.u32 %v2156, 7
    %v2158 = vadd.s32 %v2157, 24
    %2159 = vset.pattern.permute.xlu0 %v2158
    %2160 = vperm.xlu0 %2159, %v2137
    %v2161 = vpop.permute.xlu0 %2160
    %v2162 = vperm.slane %v1511, 4
    %v2163 = vlaneseq
    %v2164 = vshrl.u32 %v2163, 7
    %2166 = vset.pattern.permute.xlu0 %v2164
    %2167 = vperm.xlu0 %2166, %v2162
    %v2168 = vpop.permute.xlu0 %2167
    %v2169 = vlaneseq
    %v2170 = vshrl.u32 %v2169, 7
    %v2171 = vadd.s32 %v2170, 8
    %2172 = vset.pattern.permute.xlu0 %v2171
    %2173 = vperm.xlu0 %2172, %v2162
    %v2174 = vpop.permute.xlu0 %2173
    %v2175 = vlaneseq
    %v2176 = vshrl.u32 %v2175, 7
    %v2177 = vadd.s32 %v2176, 16
    %2178 = vset.pattern.permute.xlu0 %v2177
    %2179 = vperm.xlu0 %2178, %v2162
    %v2180 = vpop.permute.xlu0 %2179
    %v2181 = vlaneseq
    %v2182 = vshrl.u32 %v2181, 7
    %v2183 = vadd.s32 %v2182, 24
    %2184 = vset.pattern.permute.xlu0 %v2183
    %2185 = vperm.xlu0 %2184, %v2162
    %v2186 = vpop.permute.xlu0 %2185
    %v2187 = vperm.slane %v1511, 5
    %v2188 = vlaneseq
    %v2189 = vshrl.u32 %v2188, 7
    %2191 = vset.pattern.permute.xlu0 %v2189
    %2192 = vperm.xlu0 %2191, %v2187
    %v2193 = vpop.permute.xlu0 %2192
    %v2194 = vlaneseq
    %v2195 = vshrl.u32 %v2194, 7
    %v2196 = vadd.s32 %v2195, 8
    %2197 = vset.pattern.permute.xlu0 %v2196
    %2198 = vperm.xlu0 %2197, %v2187
    %v2199 = vpop.permute.xlu0 %2198
    %v2200 = vlaneseq
    %v2201 = vshrl.u32 %v2200, 7
    %v2202 = vadd.s32 %v2201, 16
    %2203 = vset.pattern.permute.xlu0 %v2202
    %2204 = vperm.xlu0 %2203, %v2187
    %v2205 = vpop.permute.xlu0 %2204
    %v2206 = vlaneseq
    %v2207 = vshrl.u32 %v2206, 7
    %v2208 = vadd.s32 %v2207, 24
    %2209 = vset.pattern.permute.xlu0 %v2208
    %2210 = vperm.xlu0 %2209, %v2187
    %v2211 = vpop.permute.xlu0 %2210
    %v2212 = vld [vmem:[#allocation2] sm:$0xff]
    %v2213 = vld [vmem:[#allocation2 + $0x8] sm:$0xff]
    %v2214 = vld [vmem:[#allocation2 + $0x10] sm:$0xff]
    %v2215 = vld [vmem:[#allocation2 + $0x18] sm:$0xff]
    %v2216 = vld [vmem:[#allocation2 + $0x20] sm:$0xff]
    %v2217 = vld [vmem:[#allocation2 + $0x28] sm:$0xff]
    %v2218 = vld [vmem:[#allocation2 + $0x30] sm:$0xff]
    %v2219 = vld [vmem:[#allocation2 + $0x38] sm:$0xff]
    %v2220 = vld [vmem:[#allocation2 + $0x40] sm:$0xff]
    %v2221 = vld [vmem:[#allocation2 + $0x48] sm:$0xff]
    %v2222 = vld [vmem:[#allocation2 + $0x50] sm:$0xff]
    %v2223 = vld [vmem:[#allocation2 + $0x58] sm:$0xff]
    %v2224 = vld [vmem:[#allocation2 + $0x60] sm:$0xff]
    %v2225 = vld [vmem:[#allocation2 + $0x68] sm:$0xff]
    %v2226 = vld [vmem:[#allocation2 + $0x70] sm:$0xff]
    %v2227 = vld [vmem:[#allocation2 + $0x78] sm:$0xff]
    %v2228 = vld [vmem:[#allocation2 + $0x80] sm:$0xff]
    %v2229 = vld [vmem:[#allocation2 + $0x88] sm:$0xff]
    %v2230 = vld [vmem:[#allocation2 + $0x90] sm:$0xff]
    %v2231 = vld [vmem:[#allocation2 + $0x98] sm:$0xff]
    %v2232 = vld [vmem:[#allocation2 + $0xa0] sm:$0xff]
    %v2233 = vld [vmem:[#allocation2 + $0xa8] sm:$0xff]
    %v2234 = vld [vmem:[#allocation2 + $0xb0] sm:$0xff]
    %v2235 = vld [vmem:[#allocation2 + $0xb8] sm:$0xff]
    %v2236 = vld [vmem:[#allocation2 + $0xc0] sm:$0xff]
    %v2237 = vld [vmem:[#allocation2 + $0xc8] sm:$0xff]
    %v2238 = vld [vmem:[#allocation2 + $0xd0] sm:$0xff]
    %v2239 = vld [vmem:[#allocation2 + $0xd8] sm:$0xff]
    %v2240 = vld [vmem:[#allocation2 + $0xe0] sm:$0xff]
    %v2241 = vld [vmem:[#allocation2 + $0xe8] sm:$0xff]
    %v2242 = vld [vmem:[#allocation2 + $0xf0] sm:$0xff]
    %v2243 = vld [vmem:[#allocation2 + $0xf8] sm:$0xff]
    %v2244 = vld [vmem:[#allocation2 + $0x100] sm:$0xff]
    %v2245 = vld [vmem:[#allocation2 + $0x108] sm:$0xff]
    %v2246 = vld [vmem:[#allocation2 + $0x110] sm:$0xff]
    %v2247 = vld [vmem:[#allocation2 + $0x118] sm:$0xff]
    %v2248 = vld [vmem:[#allocation2 + $0x120] sm:$0xff]
    %v2249 = vld [vmem:[#allocation2 + $0x128] sm:$0xff]
    %v2250 = vld [vmem:[#allocation2 + $0x130] sm:$0xff]
    %v2251 = vld [vmem:[#allocation2 + $0x138] sm:$0xff]
    %v2252 = vld [vmem:[#allocation2 + $0x140] sm:$0xff]
    %v2253 = vld [vmem:[#allocation2 + $0x148] sm:$0xff]
    %v2254 = vld [vmem:[#allocation2 + $0x150] sm:$0xff]
    %v2255 = vld [vmem:[#allocation2 + $0x158] sm:$0xff]
    %v2256 = vld [vmem:[#allocation2 + $0x160] sm:$0xff]
    %v2257 = vld [vmem:[#allocation2 + $0x168] sm:$0xff]
    %v2258 = vld [vmem:[#allocation2 + $0x170] sm:$0xff]
    %v2259 = vld [vmem:[#allocation2 + $0x178] sm:$0xff]
    %v2260 = vld [vmem:[#allocation2 + $0x180] sm:$0xff]
    %v2261 = vld [vmem:[#allocation2 + $0x188] sm:$0xff]
    %v2262 = vld [vmem:[#allocation2 + $0x190] sm:$0xff]
    %v2263 = vld [vmem:[#allocation2 + $0x198] sm:$0xff]
    %v2264 = vld [vmem:[#allocation2 + $0x1a0] sm:$0xff]
    %v2265 = vld [vmem:[#allocation2 + $0x1a8] sm:$0xff]
    %v2266 = vld [vmem:[#allocation2 + $0x1b0] sm:$0xff]
    %v2267 = vld [vmem:[#allocation2 + $0x1b8] sm:$0xff]
    %v2268 = vmul.f32 %v1518, %v2212
    %v2269 = vmul.f32 %v1524, %v2213
    %v2270 = vmul.f32 %v1530, %v2214
    %v2271 = vmul.f32 %v1536, %v2215
    %v2272 = vmul.f32 %v1543, %v2216
    %v2273 = vmul.f32 %v1549, %v2217
    %v2274 = vmul.f32 %v1555, %v2218
    %v2275 = vmul.f32 %v1561, %v2219
    %v2276 = vmul.f32 %v1568, %v2220
    %v2277 = vmul.f32 %v1574, %v2221
    %v2278 = vmul.f32 %v1580, %v2222
    %v2279 = vmul.f32 %v1586, %v2223
    %v2280 = vmul.f32 %v1593, %v2224
    %v2281 = vmul.f32 %v1599, %v2225
    %v2282 = vmul.f32 %v1605, %v2226
    %v2283 = vmul.f32 %v1611, %v2227
    %v2284 = vmul.f32 %v1618, %v2228
    %v2285 = vmul.f32 %v1624, %v2229
    %v2286 = vmul.f32 %v1630, %v2230
    %v2287 = vmul.f32 %v1636, %v2231
    %v2288 = vmul.f32 %v1643, %v2232
    %v2289 = vmul.f32 %v1649, %v2233
    %v2290 = vmul.f32 %v1655, %v2234
    %v2291 = vmul.f32 %v1661, %v2235
    %v2292 = vmul.f32 %v1668, %v2236
    %v2293 = vmul.f32 %v1674, %v2237
    %v2294 = vmul.f32 %v1680, %v2238
    %v2295 = vmul.f32 %v1686, %v2239
    %v2296 = vmul.f32 %v1693, %v2240
    %v2297 = vmul.f32 %v1699, %v2241
    %v2298 = vmul.f32 %v1705, %v2242
    %v2299 = vmul.f32 %v1711, %v2243
    %v2300 = vmul.f32 %v1718, %v2244
    %v2301 = vmul.f32 %v1724, %v2245
    %v2302 = vmul.f32 %v1730, %v2246
    %v2303 = vmul.f32 %v1736, %v2247
    %v2304 = vmul.f32 %v1743, %v2248
    %v2305 = vmul.f32 %v1749, %v2249
    %v2306 = vmul.f32 %v1755, %v2250
    %v2307 = vmul.f32 %v1761, %v2251
    %v2308 = vmul.f32 %v1768, %v2252
    %v2309 = vmul.f32 %v1774, %v2253
    %v2310 = vmul.f32 %v1780, %v2254
    %v2311 = vmul.f32 %v1786, %v2255
    %v2312 = vmul.f32 %v1793, %v2256
    %v2313 = vmul.f32 %v1799, %v2257
    %v2314 = vmul.f32 %v1805, %v2258
    %v2315 = vmul.f32 %v1811, %v2259
    %v2316 = vmul.f32 %v1818, %v2260
    %v2317 = vmul.f32 %v1824, %v2261
    %v2318 = vmul.f32 %v1830, %v2262
    %v2319 = vmul.f32 %v1836, %v2263
    %v2320 = vmul.f32 %v1843, %v2264
    %v2321 = vmul.f32 %v1849, %v2265
    %v2322 = vmul.f32 %v1855, %v2266
    %v2323 = vmul.f32 %v1861, %v2267
    %v2324 = vmul.f32 %v1868, %v2212
    %v2325 = vmul.f32 %v1874, %v2213
    %v2326 = vmul.f32 %v1880, %v2214
    %v2327 = vmul.f32 %v1886, %v2215
    %v2328 = vmul.f32 %v1893, %v2216
    %v2329 = vmul.f32 %v1899, %v2217
    %v2330 = vmul.f32 %v1905, %v2218
    %v2331 = vmul.f32 %v1911, %v2219
    %v2332 = vmul.f32 %v1918, %v2220
    %v2333 = vmul.f32 %v1924, %v2221
    %v2334 = vmul.f32 %v1930, %v2222
    %v2335 = vmul.f32 %v1936, %v2223
    %v2336 = vmul.f32 %v1943, %v2224
    %v2337 = vmul.f32 %v1949, %v2225
    %v2338 = vmul.f32 %v1955, %v2226
    %v2339 = vmul.f32 %v1961, %v2227
    %v2340 = vmul.f32 %v1968, %v2228
    %v2341 = vmul.f32 %v1974, %v2229
    %v2342 = vmul.f32 %v1980, %v2230
    %v2343 = vmul.f32 %v1986, %v2231
    %v2344 = vmul.f32 %v1993, %v2232
    %v2345 = vmul.f32 %v1999, %v2233
    %v2346 = vmul.f32 %v2005, %v2234
    %v2347 = vmul.f32 %v2011, %v2235
    %v2348 = vmul.f32 %v2018, %v2236
    %v2349 = vmul.f32 %v2024, %v2237
    %v2350 = vmul.f32 %v2030, %v2238
    %v2351 = vmul.f32 %v2036, %v2239
    %v2352 = vmul.f32 %v2043, %v2240
    %v2353 = vmul.f32 %v2049, %v2241
    %v2354 = vmul.f32 %v2055, %v2242
    %v2355 = vmul.f32 %v2061, %v2243
    %v2356 = vmul.f32 %v2068, %v2244
    %v2357 = vmul.f32 %v2074, %v2245
    %v2358 = vmul.f32 %v2080, %v2246
    %v2359 = vmul.f32 %v2086, %v2247
    %v2360 = vmul.f32 %v2093, %v2248
    %v2361 = vmul.f32 %v2099, %v2249
    %v2362 = vmul.f32 %v2105, %v2250
    %v2363 = vmul.f32 %v2111, %v2251
    %v2364 = vmul.f32 %v2118, %v2252
    %v2365 = vmul.f32 %v2124, %v2253
    %v2366 = vmul.f32 %v2130, %v2254
    %v2367 = vmul.f32 %v2136, %v2255
    %v2368 = vmul.f32 %v2143, %v2256
    %v2369 = vmul.f32 %v2149, %v2257
    %v2370 = vmul.f32 %v2155, %v2258
    %v2371 = vmul.f32 %v2161, %v2259
    %v2372 = vmul.f32 %v2168, %v2260
    %v2373 = vmul.f32 %v2174, %v2261
    %v2374 = vmul.f32 %v2180, %v2262
    %v2375 = vmul.f32 %v2186, %v2263
    %v2376 = vmul.f32 %v2193, %v2264
    %v2377 = vmul.f32 %v2199, %v2265
    %v2378 = vmul.f32 %v2205, %v2266
    %v2379 = vmul.f32 %v2211, %v2267
    %vm2380 = vcmask 15360
    %v2381 = vsel %vm2380, %v2268, 0.0
    %v2382 = vsel %vm2380, %v2269, 0.0
    %v2383 = vadd.f32 %v2381, %v2382
    %v2384 = vsel %vm2380, %v2270, 0.0
    %v2385 = vadd.f32 %v2383, %v2384
    %v2386 = vsel %vm2380, %v2271, 0.0
    %v2387 = vadd.f32 %v2385, %v2386
    %v2388 = vrot.slane %v2387, 4
    %v2389 = vadd.f32 %v2387, %v2388
    %v2390 = vrot.slane %v2389, 2
    %v2391 = vadd.f32 %v2389, %v2390
    %v2392 = vrot.slane %v2391, 1
    %v2393 = vadd.f32 %v2391, %v2392
    %v2394 = vsel %vm2380, %v2272, 0.0
    %v2395 = vsel %vm2380, %v2273, 0.0
    %v2396 = vadd.f32 %v2394, %v2395
    %v2397 = vsel %vm2380, %v2274, 0.0
    %v2398 = vadd.f32 %v2396, %v2397
    %v2399 = vsel %vm2380, %v2275, 0.0
    %v2400 = vadd.f32 %v2398, %v2399
    %v2401 = vrot.slane %v2400, 4
    %v2402 = vadd.f32 %v2400, %v2401
    %v2403 = vrot.slane %v2402, 2
    %v2404 = vadd.f32 %v2402, %v2403
    %v2405 = vrot.slane %v2404, 1
    %v2406 = vadd.f32 %v2404, %v2405
    %v2407 = vsel %vm2380, %v2276, 0.0
    %v2408 = vsel %vm2380, %v2277, 0.0
    %v2409 = vadd.f32 %v2407, %v2408
    %v2410 = vsel %vm2380, %v2278, 0.0
    %v2411 = vadd.f32 %v2409, %v2410
    %v2412 = vsel %vm2380, %v2279, 0.0
    %v2413 = vadd.f32 %v2411, %v2412
    %v2414 = vrot.slane %v2413, 4
    %v2415 = vadd.f32 %v2413, %v2414
    %v2416 = vrot.slane %v2415, 2
    %v2417 = vadd.f32 %v2415, %v2416
    %v2418 = vrot.slane %v2417, 1
    %v2419 = vadd.f32 %v2417, %v2418
    %v2420 = vsel %vm2380, %v2280, 0.0
    %v2421 = vsel %vm2380, %v2281, 0.0
    %v2422 = vadd.f32 %v2420, %v2421
    %v2423 = vsel %vm2380, %v2282, 0.0
    %v2424 = vadd.f32 %v2422, %v2423
    %v2425 = vsel %vm2380, %v2283, 0.0
    %v2426 = vadd.f32 %v2424, %v2425
    %v2427 = vrot.slane %v2426, 4
    %v2428 = vadd.f32 %v2426, %v2427
    %v2429 = vrot.slane %v2428, 2
    %v2430 = vadd.f32 %v2428, %v2429
    %v2431 = vrot.slane %v2430, 1
    %v2432 = vadd.f32 %v2430, %v2431
    %v2433 = vsel %vm2380, %v2284, 0.0
    %v2434 = vsel %vm2380, %v2285, 0.0
    %v2435 = vadd.f32 %v2433, %v2434
    %v2436 = vsel %vm2380, %v2286, 0.0
    %v2437 = vadd.f32 %v2435, %v2436
    %v2438 = vsel %vm2380, %v2287, 0.0
    %v2439 = vadd.f32 %v2437, %v2438
    %v2440 = vrot.slane %v2439, 4
    %v2441 = vadd.f32 %v2439, %v2440
    %v2442 = vrot.slane %v2441, 2
    %v2443 = vadd.f32 %v2441, %v2442
    %v2444 = vrot.slane %v2443, 1
    %v2445 = vadd.f32 %v2443, %v2444
    %v2446 = vsel %vm2380, %v2288, 0.0
    %v2447 = vsel %vm2380, %v2289, 0.0
    %v2448 = vadd.f32 %v2446, %v2447
    %v2449 = vsel %vm2380, %v2290, 0.0
    %v2450 = vadd.f32 %v2448, %v2449
    %v2451 = vsel %vm2380, %v2291, 0.0
    %v2452 = vadd.f32 %v2450, %v2451
    %v2453 = vrot.slane %v2452, 4
    %v2454 = vadd.f32 %v2452, %v2453
    %v2455 = vrot.slane %v2454, 2
    %v2456 = vadd.f32 %v2454, %v2455
    %v2457 = vrot.slane %v2456, 1
    %v2458 = vadd.f32 %v2456, %v2457
    %v2459 = vsel %vm2380, %v2292, 0.0
    %v2460 = vsel %vm2380, %v2293, 0.0
    %v2461 = vadd.f32 %v2459, %v2460
    %v2462 = vsel %vm2380, %v2294, 0.0
    %v2463 = vadd.f32 %v2461, %v2462
    %v2464 = vsel %vm2380, %v2295, 0.0
    %v2465 = vadd.f32 %v2463, %v2464
    %v2466 = vrot.slane %v2465, 4
    %v2467 = vadd.f32 %v2465, %v2466
    %v2468 = vrot.slane %v2467, 2
    %v2469 = vadd.f32 %v2467, %v2468
    %v2470 = vrot.slane %v2469, 1
    %v2471 = vadd.f32 %v2469, %v2470
    %v2472 = vsel %vm2380, %v2296, 0.0
    %v2473 = vsel %vm2380, %v2297, 0.0
    %v2474 = vadd.f32 %v2472, %v2473
    %v2475 = vsel %vm2380, %v2298, 0.0
    %v2476 = vadd.f32 %v2474, %v2475
    %v2477 = vsel %vm2380, %v2299, 0.0
    %v2478 = vadd.f32 %v2476, %v2477
    %v2479 = vrot.slane %v2478, 4
    %v2480 = vadd.f32 %v2478, %v2479
    %v2481 = vrot.slane %v2480, 2
    %v2482 = vadd.f32 %v2480, %v2481
    %v2483 = vrot.slane %v2482, 1
    %v2484 = vadd.f32 %v2482, %v2483
    %v2485 = vsel %vm2380, %v2300, 0.0
    %v2486 = vsel %vm2380, %v2301, 0.0
    %v2487 = vadd.f32 %v2485, %v2486
    %v2488 = vsel %vm2380, %v2302, 0.0
    %v2489 = vadd.f32 %v2487, %v2488
    %v2490 = vsel %vm2380, %v2303, 0.0
    %v2491 = vadd.f32 %v2489, %v2490
    %v2492 = vrot.slane %v2491, 4
    %v2493 = vadd.f32 %v2491, %v2492
    %v2494 = vrot.slane %v2493, 2
    %v2495 = vadd.f32 %v2493, %v2494
    %v2496 = vrot.slane %v2495, 1
    %v2497 = vadd.f32 %v2495, %v2496
    %v2498 = vsel %vm2380, %v2304, 0.0
    %v2499 = vsel %vm2380, %v2305, 0.0
    %v2500 = vadd.f32 %v2498, %v2499
    %v2501 = vsel %vm2380, %v2306, 0.0
    %v2502 = vadd.f32 %v2500, %v2501
    %v2503 = vsel %vm2380, %v2307, 0.0
    %v2504 = vadd.f32 %v2502, %v2503
    %v2505 = vrot.slane %v2504, 4
    %v2506 = vadd.f32 %v2504, %v2505
    %v2507 = vrot.slane %v2506, 2
    %v2508 = vadd.f32 %v2506, %v2507
    %v2509 = vrot.slane %v2508, 1
    %v2510 = vadd.f32 %v2508, %v2509
    %v2511 = vsel %vm2380, %v2308, 0.0
    %v2512 = vsel %vm2380, %v2309, 0.0
    %v2513 = vadd.f32 %v2511, %v2512
    %v2514 = vsel %vm2380, %v2310, 0.0
    %v2515 = vadd.f32 %v2513, %v2514
    %v2516 = vsel %vm2380, %v2311, 0.0
    %v2517 = vadd.f32 %v2515, %v2516
    %v2518 = vrot.slane %v2517, 4
    %v2519 = vadd.f32 %v2517, %v2518
    %v2520 = vrot.slane %v2519, 2
    %v2521 = vadd.f32 %v2519, %v2520
    %v2522 = vrot.slane %v2521, 1
    %v2523 = vadd.f32 %v2521, %v2522
    %v2524 = vsel %vm2380, %v2312, 0.0
    %v2525 = vsel %vm2380, %v2313, 0.0
    %v2526 = vadd.f32 %v2524, %v2525
    %v2527 = vsel %vm2380, %v2314, 0.0
    %v2528 = vadd.f32 %v2526, %v2527
    %v2529 = vsel %vm2380, %v2315, 0.0
    %v2530 = vadd.f32 %v2528, %v2529
    %v2531 = vrot.slane %v2530, 4
    %v2532 = vadd.f32 %v2530, %v2531
    %v2533 = vrot.slane %v2532, 2
    %v2534 = vadd.f32 %v2532, %v2533
    %v2535 = vrot.slane %v2534, 1
    %v2536 = vadd.f32 %v2534, %v2535
    %v2537 = vsel %vm2380, %v2316, 0.0
    %v2538 = vsel %vm2380, %v2317, 0.0
    %v2539 = vadd.f32 %v2537, %v2538
    %v2540 = vsel %vm2380, %v2318, 0.0
    %v2541 = vadd.f32 %v2539, %v2540
    %v2542 = vsel %vm2380, %v2319, 0.0
    %v2543 = vadd.f32 %v2541, %v2542
    %v2544 = vrot.slane %v2543, 4
    %v2545 = vadd.f32 %v2543, %v2544
    %v2546 = vrot.slane %v2545, 2
    %v2547 = vadd.f32 %v2545, %v2546
    %v2548 = vrot.slane %v2547, 1
    %v2549 = vadd.f32 %v2547, %v2548
    %v2550 = vsel %vm2380, %v2320, 0.0
    %v2551 = vsel %vm2380, %v2321, 0.0
    %v2552 = vadd.f32 %v2550, %v2551
    %v2553 = vsel %vm2380, %v2322, 0.0
    %v2554 = vadd.f32 %v2552, %v2553
    %v2555 = vsel %vm2380, %v2323, 0.0
    %v2556 = vadd.f32 %v2554, %v2555
    %v2557 = vrot.slane %v2556, 4
    %v2558 = vadd.f32 %v2556, %v2557
    %v2559 = vrot.slane %v2558, 2
    %v2560 = vadd.f32 %v2558, %v2559
    %v2561 = vrot.slane %v2560, 1
    %v2562 = vadd.f32 %v2560, %v2561
    %v2563 = vsel %vm2380, %v2324, 0.0
    %v2564 = vsel %vm2380, %v2325, 0.0
    %v2565 = vadd.f32 %v2563, %v2564
    %v2566 = vsel %vm2380, %v2326, 0.0
    %v2567 = vadd.f32 %v2565, %v2566
    %v2568 = vsel %vm2380, %v2327, 0.0
    %v2569 = vadd.f32 %v2567, %v2568
    %v2570 = vrot.slane %v2569, 4
    %v2571 = vadd.f32 %v2569, %v2570
    %v2572 = vrot.slane %v2571, 2
    %v2573 = vadd.f32 %v2571, %v2572
    %v2574 = vrot.slane %v2573, 1
    %v2575 = vadd.f32 %v2573, %v2574
    %v2576 = vsel %vm2380, %v2328, 0.0
    %v2577 = vsel %vm2380, %v2329, 0.0
    %v2578 = vadd.f32 %v2576, %v2577
    %v2579 = vsel %vm2380, %v2330, 0.0
    %v2580 = vadd.f32 %v2578, %v2579
    %v2581 = vsel %vm2380, %v2331, 0.0
    %v2582 = vadd.f32 %v2580, %v2581
    %v2583 = vrot.slane %v2582, 4
    %v2584 = vadd.f32 %v2582, %v2583
    %v2585 = vrot.slane %v2584, 2
    %v2586 = vadd.f32 %v2584, %v2585
    %v2587 = vrot.slane %v2586, 1
    %v2588 = vadd.f32 %v2586, %v2587
    %v2589 = vsel %vm2380, %v2332, 0.0
    %v2590 = vsel %vm2380, %v2333, 0.0
    %v2591 = vadd.f32 %v2589, %v2590
    %v2592 = vsel %vm2380, %v2334, 0.0
    %v2593 = vadd.f32 %v2591, %v2592
    %v2594 = vsel %vm2380, %v2335, 0.0
    %v2595 = vadd.f32 %v2593, %v2594
    %v2596 = vrot.slane %v2595, 4
    %v2597 = vadd.f32 %v2595, %v2596
    %v2598 = vrot.slane %v2597, 2
    %v2599 = vadd.f32 %v2597, %v2598
    %v2600 = vrot.slane %v2599, 1
    %v2601 = vadd.f32 %v2599, %v2600
    %v2602 = vsel %vm2380, %v2336, 0.0
    %v2603 = vsel %vm2380, %v2337, 0.0
    %v2604 = vadd.f32 %v2602, %v2603
    %v2605 = vsel %vm2380, %v2338, 0.0
    %v2606 = vadd.f32 %v2604, %v2605
    %v2607 = vsel %vm2380, %v2339, 0.0
    %v2608 = vadd.f32 %v2606, %v2607
    %v2609 = vrot.slane %v2608, 4
    %v2610 = vadd.f32 %v2608, %v2609
    %v2611 = vrot.slane %v2610, 2
    %v2612 = vadd.f32 %v2610, %v2611
    %v2613 = vrot.slane %v2612, 1
    %v2614 = vadd.f32 %v2612, %v2613
    %v2615 = vsel %vm2380, %v2340, 0.0
    %v2616 = vsel %vm2380, %v2341, 0.0
    %v2617 = vadd.f32 %v2615, %v2616
    %v2618 = vsel %vm2380, %v2342, 0.0
    %v2619 = vadd.f32 %v2617, %v2618
    %v2620 = vsel %vm2380, %v2343, 0.0
    %v2621 = vadd.f32 %v2619, %v2620
    %v2622 = vrot.slane %v2621, 4
    %v2623 = vadd.f32 %v2621, %v2622
    %v2624 = vrot.slane %v2623, 2
    %v2625 = vadd.f32 %v2623, %v2624
    %v2626 = vrot.slane %v2625, 1
    %v2627 = vadd.f32 %v2625, %v2626
    %v2628 = vsel %vm2380, %v2344, 0.0
    %v2629 = vsel %vm2380, %v2345, 0.0
    %v2630 = vadd.f32 %v2628, %v2629
    %v2631 = vsel %vm2380, %v2346, 0.0
    %v2632 = vadd.f32 %v2630, %v2631
    %v2633 = vsel %vm2380, %v2347, 0.0
    %v2634 = vadd.f32 %v2632, %v2633
    %v2635 = vrot.slane %v2634, 4
    %v2636 = vadd.f32 %v2634, %v2635
    %v2637 = vrot.slane %v2636, 2
    %v2638 = vadd.f32 %v2636, %v2637
    %v2639 = vrot.slane %v2638, 1
    %v2640 = vadd.f32 %v2638, %v2639
    %v2641 = vsel %vm2380, %v2348, 0.0
    %v2642 = vsel %vm2380, %v2349, 0.0
    %v2643 = vadd.f32 %v2641, %v2642
    %v2644 = vsel %vm2380, %v2350, 0.0
    %v2645 = vadd.f32 %v2643, %v2644
    %v2646 = vsel %vm2380, %v2351, 0.0
    %v2647 = vadd.f32 %v2645, %v2646
    %v2648 = vrot.slane %v2647, 4
    %v2649 = vadd.f32 %v2647, %v2648
    %v2650 = vrot.slane %v2649, 2
    %v2651 = vadd.f32 %v2649, %v2650
    %v2652 = vrot.slane %v2651, 1
    %v2653 = vadd.f32 %v2651, %v2652
    %v2654 = vsel %vm2380, %v2352, 0.0
    %v2655 = vsel %vm2380, %v2353, 0.0
    %v2656 = vadd.f32 %v2654, %v2655
    %v2657 = vsel %vm2380, %v2354, 0.0
    %v2658 = vadd.f32 %v2656, %v2657
    %v2659 = vsel %vm2380, %v2355, 0.0
    %v2660 = vadd.f32 %v2658, %v2659
    %v2661 = vrot.slane %v2660, 4
    %v2662 = vadd.f32 %v2660, %v2661
    %v2663 = vrot.slane %v2662, 2
    %v2664 = vadd.f32 %v2662, %v2663
    %v2665 = vrot.slane %v2664, 1
    %v2666 = vadd.f32 %v2664, %v2665
    %v2667 = vsel %vm2380, %v2356, 0.0
    %v2668 = vsel %vm2380, %v2357, 0.0
    %v2669 = vadd.f32 %v2667, %v2668
    %v2670 = vsel %vm2380, %v2358, 0.0
    %v2671 = vadd.f32 %v2669, %v2670
    %v2672 = vsel %vm2380, %v2359, 0.0
    %v2673 = vadd.f32 %v2671, %v2672
    %v2674 = vrot.slane %v2673, 4
    %v2675 = vadd.f32 %v2673, %v2674
    %v2676 = vrot.slane %v2675, 2
    %v2677 = vadd.f32 %v2675, %v2676
    %v2678 = vrot.slane %v2677, 1
    %v2679 = vadd.f32 %v2677, %v2678
    %v2680 = vsel %vm2380, %v2360, 0.0
    %v2681 = vsel %vm2380, %v2361, 0.0
    %v2682 = vadd.f32 %v2680, %v2681
    %v2683 = vsel %vm2380, %v2362, 0.0
    %v2684 = vadd.f32 %v2682, %v2683
    %v2685 = vsel %vm2380, %v2363, 0.0
    %v2686 = vadd.f32 %v2684, %v2685
    %v2687 = vrot.slane %v2686, 4
    %v2688 = vadd.f32 %v2686, %v2687
    %v2689 = vrot.slane %v2688, 2
    %v2690 = vadd.f32 %v2688, %v2689
    %v2691 = vrot.slane %v2690, 1
    %v2692 = vadd.f32 %v2690, %v2691
    %v2693 = vsel %vm2380, %v2364, 0.0
    %v2694 = vsel %vm2380, %v2365, 0.0
    %v2695 = vadd.f32 %v2693, %v2694
    %v2696 = vsel %vm2380, %v2366, 0.0
    %v2697 = vadd.f32 %v2695, %v2696
    %v2698 = vsel %vm2380, %v2367, 0.0
    %v2699 = vadd.f32 %v2697, %v2698
    %v2700 = vrot.slane %v2699, 4
    %v2701 = vadd.f32 %v2699, %v2700
    %v2702 = vrot.slane %v2701, 2
    %v2703 = vadd.f32 %v2701, %v2702
    %v2704 = vrot.slane %v2703, 1
    %v2705 = vadd.f32 %v2703, %v2704
    %v2706 = vsel %vm2380, %v2368, 0.0
    %v2707 = vsel %vm2380, %v2369, 0.0
    %v2708 = vadd.f32 %v2706, %v2707
    %v2709 = vsel %vm2380, %v2370, 0.0
    %v2710 = vadd.f32 %v2708, %v2709
    %v2711 = vsel %vm2380, %v2371, 0.0
    %v2712 = vadd.f32 %v2710, %v2711
    %v2713 = vrot.slane %v2712, 4
    %v2714 = vadd.f32 %v2712, %v2713
    %v2715 = vrot.slane %v2714, 2
    %v2716 = vadd.f32 %v2714, %v2715
    %v2717 = vrot.slane %v2716, 1
    %v2718 = vadd.f32 %v2716, %v2717
    %v2719 = vsel %vm2380, %v2372, 0.0
    %v2720 = vsel %vm2380, %v2373, 0.0
    %v2721 = vadd.f32 %v2719, %v2720
    %v2722 = vsel %vm2380, %v2374, 0.0
    %v2723 = vadd.f32 %v2721, %v2722
    %v2724 = vsel %vm2380, %v2375, 0.0
    %v2725 = vadd.f32 %v2723, %v2724
    %v2726 = vrot.slane %v2725, 4
    %v2727 = vadd.f32 %v2725, %v2726
    %v2728 = vrot.slane %v2727, 2
    %v2729 = vadd.f32 %v2727, %v2728
    %v2730 = vrot.slane %v2729, 1
    %v2731 = vadd.f32 %v2729, %v2730
    %v2732 = vsel %vm2380, %v2376, 0.0
    %v2733 = vsel %vm2380, %v2377, 0.0
    %v2734 = vadd.f32 %v2732, %v2733
    %v2735 = vsel %vm2380, %v2378, 0.0
    %v2736 = vadd.f32 %v2734, %v2735
    %v2737 = vsel %vm2380, %v2379, 0.0
    %v2738 = vadd.f32 %v2736, %v2737
    %v2739 = vrot.slane %v2738, 4
    %v2740 = vadd.f32 %v2738, %v2739
    %v2741 = vrot.slane %v2740, 2
    %v2742 = vadd.f32 %v2740, %v2741
    %v2743 = vrot.slane %v2742, 1
    %v2744 = vadd.f32 %v2742, %v2743
    %v2745 = vld [vmem:[%s14] sm:$0xff]
    %v2746 = vld [vmem:[%s14 + $0x8] sm:$0x3f]
    %v2749 = vrot.slane %v2745, 1
    %v2750 = vrot.slane %v2745, 2
    %v2751 = vrot.slane %v2745, 3
    %v2752 = vrot.slane %v2745, 4
    %v2753 = vrot.slane %v2745, 5
    %v2754 = vrot.slane %v2745, 6
    %v2755 = vrot.slane %v2745, 7
    %v2756 = vrot.slane %v2746, 1
    %v2757 = vrot.slane %v2746, 2
    %v2758 = vrot.slane %v2746, 3
    %v2759 = vrot.slane %v2746, 4
    %v2760 = vrot.slane %v2746, 5
    %v2775 = vadd.f32 %v2393, %v2745
    %v2776 = vadd.f32 %v2406, %v2749
    %v2777 = vadd.f32 %v2419, %v2750
    %v2778 = vadd.f32 %v2432, %v2751
    %v2779 = vadd.f32 %v2445, %v2752
    %v2780 = vadd.f32 %v2458, %v2753
    %v2781 = vadd.f32 %v2471, %v2754
    %v2782 = vadd.f32 %v2484, %v2755
    %v2783 = vadd.f32 %v2497, %v2746
    %v2784 = vadd.f32 %v2510, %v2756
    %v2785 = vadd.f32 %v2523, %v2757
    %v2786 = vadd.f32 %v2536, %v2758
    %v2787 = vadd.f32 %v2549, %v2759
    %v2788 = vadd.f32 %v2562, %v2760
    %v2789 = vadd.f32 %v2575, %v2745
    %v2790 = vadd.f32 %v2588, %v2749
    %v2791 = vadd.f32 %v2601, %v2750
    %v2792 = vadd.f32 %v2614, %v2751
    %v2793 = vadd.f32 %v2627, %v2752
    %v2794 = vadd.f32 %v2640, %v2753
    %v2795 = vadd.f32 %v2653, %v2754
    %v2796 = vadd.f32 %v2666, %v2755
    %v2797 = vadd.f32 %v2679, %v2746
    %v2798 = vadd.f32 %v2692, %v2756
    %v2799 = vadd.f32 %v2705, %v2757
    %v2800 = vadd.f32 %v2718, %v2758
    %v2801 = vadd.f32 %v2731, %v2759
    %v2802 = vadd.f32 %v2744, %v2760
    %v2831 = vrot.slane %v2776, 7
    %v2832 = vsel %vm86, %v2831, %v2775
    %v2833 = vrot.slane %v2777, 6
    %v2834 = vsel %vm90, %v2833, %v2832
    %v2835 = vrot.slane %v2778, 5
    %vm2836 = vcmask 1043459
    %v2837 = vsel %vm2836, %v2835, %v2834
    %v2838 = vrot.slane %v2779, 4
    %vm2839 = vcmask 1044484
    %v2840 = vsel %vm2839, %v2838, %v2837
    %v2841 = vrot.slane %v2780, 3
    %vm2842 = vcmask 1045509
    %v2843 = vsel %vm2842, %v2841, %v2840
    %v2844 = vrot.slane %v2781, 2
    %vm2845 = vcmask 1046534
    %v2846 = vsel %vm2845, %v2844, %v2843
    %v2847 = vrot.slane %v2782, 1
    %vm2848 = vcmask 1047559
    %v2849 = vsel %vm2848, %v2847, %v2846
    %v2850 = vrot.slane %v2784, 7
    %v2851 = vsel %vm86, %v2850, %v2783
    %v2852 = vrot.slane %v2785, 6
    %v2853 = vsel %vm90, %v2852, %v2851
    %v2854 = vrot.slane %v2786, 5
    %v2855 = vsel %vm2836, %v2854, %v2853
    %v2856 = vrot.slane %v2787, 4
    %v2857 = vsel %vm2839, %v2856, %v2855
    %v2858 = vrot.slane %v2788, 3
    %v2859 = vsel %vm2842, %v2858, %v2857
    %v2860 = vrot.slane %v2790, 7
    %v2861 = vsel %vm86, %v2860, %v2789
    %v2862 = vrot.slane %v2791, 6
    %v2863 = vsel %vm90, %v2862, %v2861
    %v2864 = vrot.slane %v2792, 5
    %v2865 = vsel %vm2836, %v2864, %v2863
    %v2866 = vrot.slane %v2793, 4
    %v2867 = vsel %vm2839, %v2866, %v2865
    %v2868 = vrot.slane %v2794, 3
    %v2869 = vsel %vm2842, %v2868, %v2867
    %v2870 = vrot.slane %v2795, 2
    %v2871 = vsel %vm2845, %v2870, %v2869
    %v2872 = vrot.slane %v2796, 1
    %v2873 = vsel %vm2848, %v2872, %v2871
    %v2874 = vrot.slane %v2798, 7
    %v2875 = vsel %vm86, %v2874, %v2797
    %v2876 = vrot.slane %v2799, 6
    %v2877 = vsel %vm90, %v2876, %v2875
    %v2878 = vrot.slane %v2800, 5
    %v2879 = vsel %vm2836, %v2878, %v2877
    %v2880 = vrot.slane %v2801, 4
    %v2881 = vsel %vm2839, %v2880, %v2879
    %v2882 = vrot.slane %v2802, 3
    %v2883 = vsel %vm2842, %v2882, %v2881
    %2888 = vst.msk [vmem:[%s15] sm:$0xff] %vm2380, %v2849
    %vm2889 = vcmask 13312
    %2890 = vst.msk [vmem:[%s15 + $0x8] sm:$0x3f] %vm2889, %v2859
    %2891 = vst.msk [vmem:[%s15 + $0x10] sm:$0xff] %vm2380, %v2873
    %2892 = vst.msk [vmem:[%s15 + $0x18] sm:$0x3f] %vm2889, %v2883
    // Predicated region
    $region66: #{cnn_attn_forward.1} parent=1 // pred_check
      _
    $region67: #{cnn_attn_forward.1} parent=1 // pred_check_branch
      %2894 = sbr.rel (0) target = $region69
    $region68: #{cnn_attn_forward.1} parent=1 // pred_region
      _
    $region69: #{cnn_attn_forward.1} parent=1 // pred_fallthru
      _
    // Predicated region
    $region70: #{cnn_attn_forward.1} parent=1 // pred_check
      _
    $region71: #{cnn_attn_forward.1} parent=1 // pred_check_branch
      %2896 = sbr.rel (0) target = $region73
    $region72: #{cnn_attn_forward.1} parent=1 // pred_region
      _
    $region73: #{cnn_attn_forward.1} parent=1 // pred_fallthru
      _
    %2897 = vsyncpa [#allocation3], 1

</llo_original>
